<compile_context>
chip_gen: v5e
topology: v5e:2x2
jax: 0.10.0
libtpu: 0.0.40
codegen_flags: <defaults>
</compile_context>

<pallas_src>
import jax
import jax.numpy as jnp
from jax.experimental import pallas as pl
from jax.experimental.pallas import tpu as pltpu

NEG_INF = -1e30  # finite "minus infinity" for padded class logits


# --------------------------------------------------------------------------- #
# NNConv layer, tiled over destination-node tiles.
#   adj_ref : [TILE_N, R*N]  bf16, degree-normalized, relations flattened into K
#   hs_ref  : [R*N, D]       bf16, source activations with w[r] folded in
# One MXU call per tile does both the neighbor sum and the relation sum.
# --------------------------------------------------------------------------- #
def _nnconv_hidden_kernel(adj_ref, hs_ref, bias_ref, out_ref):
    acc = jnp.dot(adj_ref[...], hs_ref[...], preferred_element_type=jnp.float32)
    out_ref[...] = jnp.tanh(acc + bias_ref[...]).astype(out_ref.dtype)


def _nnconv_head_kernel(adj_ref, hs_ref, bias_ref, w2_ref, b2_ref, out_ref):
    f32 = jnp.float32
    acc = jnp.dot(adj_ref[...], hs_ref[...], preferred_element_type=f32)
    h = jnp.tanh(acc + bias_ref[...])                                   # [TN, D] f32
    # fc2 + log_softmax fused into the last NNConv pass.  b2 is padded with -1e30 on the
    # fake class columns, so padded lanes contribute exp(.) == 0 (exact).
    logits = jnp.dot(h, w2_ref[...], preferred_element_type=f32) + b2_ref[...]
    m = jnp.max(logits, axis=1, keepdims=True)
    z = logits - m
    lse = jnp.log(jnp.sum(jnp.exp(z), axis=1, keepdims=True))
    out_ref[...] = z - lse


def _nnconv_call(kernel, adj2_bf, hs_bf, bias, extra_inputs, out_dim, out_dtype, tile_n):
    N, K = adj2_bf.shape                   # K = R * N
    D = hs_bf.shape[1]
    assert N % tile_n == 0, "tile_n must divide N"
    grid = (N // tile_n,)

    in_specs = [
        pl.BlockSpec((tile_n, K), lambda i: (i, 0)),   # streamed adj dst-tile (the only big DMA)
        pl.BlockSpec((K, D), lambda i: (0, 0)),        # w-folded source activations (invariant)
        pl.BlockSpec((1, D), lambda i: (0, 0)),        # conv bias (invariant)
    ]
    args = [adj2_bf, hs_bf, bias]
    for arr in extra_inputs:                           # (W2_pad, b2_pad) for the head
        in_specs.append(pl.BlockSpec(arr.shape, lambda i, _nd=arr.ndim: (0,) * _nd))
        args.append(arr)

    out_itemsize = jnp.dtype(out_dtype).itemsize
    flops = 2 * N * K * D + (2 * N * D * out_dim if extra_inputs else 0)
    transcendentals = N * D + (N * out_dim if extra_inputs else 0)
    bytes_accessed = (adj2_bf.size * 2 + hs_bf.size * 2 + bias.size * 4
                      + N * out_dim * out_itemsize
                      + sum(int(a.size) * a.dtype.itemsize for a in extra_inputs))

    # Explicit VMEM budget derived from the actual per-call need (double-buffered blocks),
    # generous headroom, capped well under v7x's 64 MiB per-TC VMEM.
    need = (2 * tile_n * K * 2                       # adj dst tile, bf16, double-buffered
            + 2 * K * D * 2                          # hs (constant index map)
            + 2 * D * 4                              # bias
            + 2 * tile_n * out_dim * out_itemsize    # output tile
            + 2 * sum(int(a.size) * a.dtype.itemsize for a in extra_inputs))
    vmem_limit = int(min(48 << 20, max(16 << 20, 4 * need)))

    return pl.pallas_call(
        kernel,
        out_shape=jax.ShapeDtypeStruct((N, out_dim), out_dtype),
        grid=grid,
        in_specs=in_specs,
        out_specs=pl.BlockSpec((tile_n, out_dim), lambda i: (i, 0)),
        compiler_params=pltpu.CompilerParams(
            dimension_semantics=("parallel",),       # dst tiles -> megacore / 2-TC split
            vmem_limit_bytes=vmem_limit,
        ),
        cost_estimate=pl.CostEstimate(flops=flops,
                                      transcendentals=transcendentals,
                                      bytes_accessed=bytes_accessed),
    )(*args)


# --------------------------------------------------------------------------- #
# Full forward.
# --------------------------------------------------------------------------- #
def rshn_forward(X, fc1, rel_x, A_rel, W_nn, b_nn, b_c1, b_c2, adj, inv_deg, W2, b2,
                 *, num_classes, tile_n=128):
    N = X.shape[0]
    D = fc1.shape[1]
    R = adj.shape[0]
    C = num_classes
    C_PAD = 128                                      # lane-dense output stores

    # Tiny prep stays in plain XLA (a dedicated pallas_call cost more than it saved):
    x = jnp.dot(X, fc1)                              # x = spmm(data.x, fc1); dropout(eval) == id
    rel = jnp.maximum(rel_x + A_rel @ rel_x, 0.0)    # relu(RConv1), eps=0, mean folded into A_rel
    rel = jnp.maximum(rel + A_rel @ rel, 0.0)        # relu(RConv2)
    w = rel @ W_nn + b_nn                            # per-relation edge-network weights [R, D]

    # Relation axis flattened into the contraction dim; degree normalization folded in:
    #   adj2[i, r*N + j] = adj[r, i, j] / deg_i        (bf16: ~0.2% rounding, inside tolerance)
    adj2_bf = (jnp.transpose(adj * inv_deg[None, :, :], (1, 0, 2))
               .reshape(N, R * N).astype(jnp.bfloat16))

    # NNConv1 + tanh.  Fold w into the activations once (hoisted out of the grid loop).
    hs1 = (w[:, None, :] * x[None, :, :]).reshape(R * N, D).astype(jnp.bfloat16)
    h1 = _nnconv_call(_nnconv_hidden_kernel, adj2_bf, hs1, b_c1, (),
                      D, jnp.bfloat16, tile_n)       # hidden activations carried in bf16

    # NNConv2 + tanh + fc2 + log_softmax, fused; class dim padded to 128 lanes.
    hs2 = (w[:, None, :] * h1.astype(jnp.float32)[None, :, :]
           ).reshape(R * N, D).astype(jnp.bfloat16)
    W2_pad = jnp.zeros((D, C_PAD), jnp.float32).at[:, :C].set(W2)
    b2_pad = jnp.full((1, C_PAD), NEG_INF, jnp.float32).at[:, :C].set(b2)
    out_pad = _nnconv_call(_nnconv_head_kernel, adj2_bf, hs2, b_c2, (W2_pad, b2_pad),
                           C_PAD, jnp.float32, tile_n)
    return out_pad[:, :C]


# --------------------------------------------------------------------------- #
# Pure-JAX f32 reference (tolerance sanity check of the bf16 fast path).
# --------------------------------------------------------------------------- #
def _reference(X, fc1, rel_x, A_rel, W_nn, b_nn, b_c1, b_c2, adj, inv_deg, W2, b2):
    x = X @ fc1
    rel = jnp.maximum(rel_x + A_rel @ rel_x, 0.0)
    rel = jnp.maximum(rel + A_rel @ rel, 0.0)
    w = rel @ W_nn + b_nn

    def nnconv(h, bias):
        msgs = jnp.einsum('rij,jd->rid', adj, h)
        acc = jnp.sum(msgs * w[:, None, :], axis=0)
        return jnp.tanh(acc * inv_deg + bias)

    h = nnconv(x, b_c1)
    h = nnconv(h, b_c2)
    logits = h @ W2 + b2
    return jax.nn.log_softmax(logits, axis=1)


if __name__ == "__main__":
    key = jax.random.PRNGKey(0)
    ks = jax.random.split(key, 12)

    # Small shapes consistent with the module's forward (dim is a hyperparameter).
    N, F, D = 256, 16, 128        # nodes, data.num_features, args.dim
    R, F_rel = 8, 8               # relation-graph nodes, rel_data.num_features
    C = 4                         # dataset.num_classes
    E, E_rel = 1024, 24           # edges in node graph / relation graph
    TILE_N = 128                  # destination-node tile -> grid = (N // TILE_N,)

    # ---- data ----
    X = jax.random.normal(ks[0], (N, F), jnp.float32)
    rel_x0 = jax.random.normal(ks[1], (R, F_rel), jnp.float32)

    # relation graph (edge-weighted), mean aggregation baked into A_rel
    rel_src = jax.random.randint(ks[2], (E_rel,), 0, R)
    rel_dst = jax.random.randint(ks[3], (E_rel,), 0, R)
    rel_attr = jax.random.uniform(ks[4], (E_rel,), jnp.float32)
    A_rel = jnp.zeros((R, R), jnp.float32).at[rel_dst, rel_src].add(rel_attr)
    deg_rel = jnp.zeros((R,), jnp.float32).at[rel_dst].add(1.0)
    A_rel = A_rel / jnp.maximum(deg_rel, 1.0)[:, None]

    # node graph with typed edges (data.edge_index, data.edge_type) -> dense per-relation adj
    src = jax.random.randint(ks[5], (E,), 0, N)
    dst = jax.random.randint(ks[6], (E,), 0, N)
    etype = jax.random.randint(ks[7], (E,), 0, R)
    adj = jnp.zeros((R, N, N), jnp.float32).at[etype, dst, src].add(1.0)
    deg = jnp.zeros((N,), jnp.float32).at[dst].add(1.0)
    inv_deg = (1.0 / jnp.maximum(deg, 1.0))[:, None]

    # ---- parameters (deterministic, synthetic) ----
    fc1 = jax.random.normal(ks[8], (F, D), jnp.float32) * 0.1          # self.fc1
    W_nn = jax.random.normal(ks[9], (F_rel, D), jnp.float32) * 0.1     # nn = Linear(F_rel, D)
    b_nn = jnp.zeros((1, D), jnp.float32)
    b_c1 = jnp.zeros((1, D), jnp.float32)                              # NNConv1 bias
    b_c2 = jnp.zeros((1, D), jnp.float32)                              # NNConv2 bias
    W2 = jax.random.normal(ks[10], (D, C), jnp.float32) * 0.1          # fc2 weight (as [D, C])
    b2 = jax.random.normal(ks[11], (1, C), jnp.float32) * 0.1          # fc2 bias

    out = rshn_forward(X, fc1, rel_x0, A_rel, W_nn, b_nn, b_c1, b_c2,
                       adj, inv_deg, W2, b2, num_classes=C, tile_n=TILE_N)
    out = jax.block_until_ready(out)
    assert out.shape == (N, C)

    # tolerance check of the bf16 fast path (adj, activations) against pure-JAX f32
    ref = _reference(X, fc1, rel_x0, A_rel, W_nn, b_nn, b_c1, b_c2, adj, inv_deg, W2, b2)
    max_err = float(jnp.max(jnp.abs(out - ref)))
    assert max_err < 5e-2, f"max abs err {max_err}"

    print("KERNEL_OK")
</pallas_src>

<mosaic_0001>
module attributes {stable_mosaic.version = 11 : i64} {
  func.func @_nnconv_hidden_kernel(%arg0: i32, %arg1: memref<128x2048xbf16, #tpu.memory_space<vmem>>, %arg2: memref<2048x128xbf16, #tpu.memory_space<vmem>>, %arg3: memref<1x128xf32, #tpu.memory_space<vmem>>, %arg4: memref<128x128xbf16, #tpu.memory_space<vmem>>) attributes {dimension_semantics = [#tpu.dimension_semantics<parallel>], iteration_bounds = array<i64: 2>, scalar_prefetch = 0 : i64, scratch_operands = 0 : i64, tpu.core_type = #tpu.core_type<tc>, window_params = [{transform_indices = @transform_0, window_bounds = array<i64: 128, 2048>}, {pipeline_mode = #tpu.pipeline_mode<synchronous>, transform_indices = @transform_1, window_bounds = array<i64: 2048, 128>}, {pipeline_mode = #tpu.pipeline_mode<synchronous>, transform_indices = @transform_2, window_bounds = array<i64: 1, 128>}, {transform_indices = @transform_3, window_bounds = array<i64: 128, 128>}]} {
    %c0 = arith.constant 0 : index
    %c0_0 = arith.constant 0 : index
    %0 = vector.load %arg1[%c0, %c0_0] : memref<128x2048xbf16, #tpu.memory_space<vmem>>, vector<128x2048xbf16>
    %c0_1 = arith.constant 0 : index
    %c0_2 = arith.constant 0 : index
    %1 = vector.load %arg2[%c0_1, %c0_2] : memref<2048x128xbf16, #tpu.memory_space<vmem>>, vector<2048x128xbf16>
    %cst = arith.constant dense<0.000000e+00> : vector<128x128xf32>
    %2 = tpu.matmul %0, %1, %cst {dimension_numbers = #tpu.dot_dimension_numbers<[1], [0], [0], [1], [0, 0, 1, 1], [], []>} : vector<128x2048xbf16>, vector<2048x128xbf16>, vector<128x128xf32> -> vector<128x128xf32>
    %c0_3 = arith.constant 0 : index
    %c0_4 = arith.constant 0 : index
    %3 = vector.load %arg3[%c0_3, %c0_4] : memref<1x128xf32, #tpu.memory_space<vmem>>, vector<1x128xf32>
    %4 = vector.broadcast %3 : vector<1x128xf32> to vector<128x128xf32>
    %5 = arith.addf %2, %4 : vector<128x128xf32>
    %6 = math.tanh %5 : vector<128x128xf32>
    %7 = arith.truncf %6 : vector<128x128xf32> to vector<128x128xbf16>
    %c0_5 = arith.constant 0 : index
    %c0_6 = arith.constant 0 : index
    %8 = vector.load %arg4[%c0_5, %c0_6] : memref<128x128xbf16, #tpu.memory_space<vmem>>, vector<128x128xbf16>
    tpu.vector_store %arg4[%c0_5, %c0_6], %7 {strides = array<i32>} : memref<128x128xbf16, #tpu.memory_space<vmem>>, vector<128x128xbf16>,
    return
  }
  func.func @transform_0(%arg0: i32) -> (i32, i32) {
    %c0_i32 = arith.constant 0 : i32
    %c0_i32_0 = arith.constant 0 : i32
    return %arg0, %c0_i32 : i32, i32
  }
  func.func @transform_1(%arg0: i32) -> (i32, i32) {
    %c0_i32 = arith.constant 0 : i32
    %c0_i32_0 = arith.constant 0 : i32
    %c0_i32_1 = arith.constant 0 : i32
    return %c0_i32, %c0_i32_0 : i32, i32
  }
  func.func @transform_2(%arg0: i32) -> (i32, i32) {
    %c0_i32 = arith.constant 0 : i32
    %c0_i32_0 = arith.constant 0 : i32
    %c0_i32_1 = arith.constant 0 : i32
    return %c0_i32, %c0_i32_0 : i32, i32
  }
  func.func @transform_3(%arg0: i32) -> (i32, i32) {
    %c0_i32 = arith.constant 0 : i32
    %c0_i32_0 = arith.constant 0 : i32
    return %arg0, %c0_i32 : i32, i32
  }
}

</mosaic_0001>

<llo_original>
// kernel: tpu_custom_call.1
$region0: #{tpu_custom_call.1}
  #allocation0 [shape = 'u32[]', space=smem, size = 0x4, offset = 0x4, fixed_abs, tag = 'smem constant byte address 0x4 - core index']
  #allocation1 [shape = 'u32[72,128]{1,0:T(1,128)}', space=vmem, size = 0x9000, scoped, tag = 'internal scratch']
  %s0 = inlined_call_operand.hbm [shape: bf16[256,2048], index: 0, kind: input, shape index: {}]
  %s1 = inlined_call_operand.hbm [shape: bf16[2048,128], index: 1, kind: input, shape index: {}]
  %s2 = inlined_call_operand.vmem [shape: f32[1,128], index: 2, kind: input, shape index: {}]
  %s3 = inlined_call_operand.hbm [shape: bf16[256,128], index: 3, kind: output, shape index: {}]
  %s4 = sld [smem:[#allocation0]]
  $region53: #{tpu_custom_call.1} parent=0
    _
  %s6 = ssub.s32 1, %s4
  %s7 = scalar_select 0, %s6, %s4
  $region1: #{tpu_custom_call.1} parent=0
    #allocation2 [shape = 'u8[1048576]{0}', space=vmem, size = 0x100000, scoped, tag = 'input window, operand 0']
    #allocation3 [shape = 's32[2]{0}', space=sflag, size = 0x8, scoped, tag = 'scoped memory for tpu_custom_call.1']
    #allocation4 [shape = 's32[2]{0}', space=sflag, size = 0x8, scoped, tag = 'scoped memory for tpu_custom_call.1']
    #allocation5 [shape = 'u8[524288]{0}', space=vmem, size = 0x80000, scoped, tag = 'input window, operand 1, single buffered']
    #allocation6 [shape = 's32[1]{0}', space=sflag, size = 0x4, scoped, tag = 'scoped memory for tpu_custom_call.1']
    #allocation7 [shape = 'u8[65536]{0}', space=vmem, size = 0x10000, scoped, tag = 'output window, operand 0']
    %8 = vsyncpa [#allocation3], 0
    %s9 = scalar_lea.sflag [#allocation3], 1
    %10 = vsyncpa %s9, 0
    %11 = vsyncpa [#allocation6], 0
    %12 = vsyncpa [#allocation4], 0
    %s13 = scalar_lea.sflag [#allocation4], 1
    %14 = vsyncpa %s13, 0
    loop: start=0, step=1, limit=4
    $region2: #{tpu_custom_call.1} parent=1 // loop_pre_header
      _
    $region3: #{tpu_custom_call.1} parent=1 // loop_header
      %s16 = sphi 0, %s20
      %p17 = scmp.ge.s32.totalorder %s16, 4
      %s26 = sphi 0, %s28
      %s29 = sphi 0, %s26
      %s30 = sphi 0, %s29
      %s46 = sphi 0, %s30
      %s50 = sphi 0, %s50
      %s52 = sphi 0, %s50
      %s53 = sphi 0, %s52
      %s67 = sphi 0, %s53
      %s71 = sphi 0, %s71
      %s73 = sphi 0, %s71
      %s74 = sphi 0, %s73
      %s88 = sphi 0, %s74
      %s94 = sphi 0, %s96
      %s97 = sphi 0, %s94
      %s98 = sphi 0, %s97
      %s114 = sphi 0, %s98
    $region4: #{tpu_custom_call.1} parent=1 // loop_header_branch
      %19 = sbr.rel (%p17) target = $region8
    $region5: #{tpu_custom_call.1} parent=1 // loop_body
      %s21 = ssub.s32 %s16, 1
      %s22 = ssub.s32 %s16, 2
      %s23 = sadd.s32 %s16, 1
      %s24 = ssub.s32 %s16, %s23
      %p25 = scmp.eq.s32.totalorder %s24, 0
      %s27 = sadd.s32 %s26, 1
      %s28 = scalar_select %p25, %s26, %s27
      %p31 = pneg %p25
      %p32 = scmp.eq.s32.totalorder %s16, 1
      %p33 = por %p31, %p32
      %p34 = scmp.ne.s32.totalorder %s26, %s29
      %p35 = scmp.eq.s32.totalorder %s16, 0
      %p36 = por %p34, %p35
      %p37 = scmp.ne.s32.totalorder %s26, %s29
      %p38 = scmp.eq.s32.totalorder %s21, 1
      %p39 = por %p37, %p38
      %p40 = scmp.ne.s32.totalorder %s29, %s30
      %p41 = scmp.eq.s32.totalorder %s21, 0
      %p42 = por %p40, %p41
      %p43 = scmp.ne.s32.totalorder %s29, %s30
      %p44 = scmp.eq.s32.totalorder %s22, 1
      %p45 = por %p43, %p44
      %p47 = scmp.ne.s32.totalorder %s30, %s46
      %p48 = scmp.eq.s32.totalorder %s22, 0
      %p49 = por %p47, %p48
      %s51 = sadd.s32 %s50, 1
      %p54 = scmp.eq.s32.totalorder %s16, 1
      %p55 = scmp.ne.s32.totalorder %s50, %s52
      %p56 = scmp.eq.s32.totalorder %s16, 0
      %p57 = por %p55, %p56
      %p58 = scmp.ne.s32.totalorder %s50, %s52
      %p59 = scmp.eq.s32.totalorder %s21, 1
      %p60 = por %p58, %p59
      %p61 = scmp.ne.s32.totalorder %s52, %s53
      %p62 = scmp.eq.s32.totalorder %s21, 0
      %p63 = por %p61, %p62
      %p64 = scmp.ne.s32.totalorder %s52, %s53
      %p65 = scmp.eq.s32.totalorder %s22, 1
      %p66 = por %p64, %p65
      %p68 = scmp.ne.s32.totalorder %s53, %s67
      %p69 = scmp.eq.s32.totalorder %s22, 0
      %p70 = por %p68, %p69
      %s72 = sadd.s32 %s71, 1
      %p75 = scmp.eq.s32.totalorder %s16, 1
      %p76 = scmp.ne.s32.totalorder %s71, %s73
      %p77 = scmp.eq.s32.totalorder %s16, 0
      %p78 = por %p76, %p77
      %p79 = scmp.ne.s32.totalorder %s71, %s73
      %p80 = scmp.eq.s32.totalorder %s21, 1
      %p81 = por %p79, %p80
      %p82 = scmp.ne.s32.totalorder %s73, %s74
      %p83 = scmp.eq.s32.totalorder %s21, 0
      %p84 = por %p82, %p83
      %p85 = scmp.ne.s32.totalorder %s73, %s74
      %p86 = scmp.eq.s32.totalorder %s22, 1
      %p87 = por %p85, %p86
      %p89 = scmp.ne.s32.totalorder %s74, %s88
      %p90 = scmp.eq.s32.totalorder %s22, 0
      %p91 = por %p89, %p90
      %s92 = ssub.s32 %s16, %s23
      %p93 = scmp.eq.s32.totalorder %s92, 0
      %s95 = sadd.s32 %s94, 1
      %s96 = scalar_select %p93, %s94, %s95
      %p99 = pneg %p93
      %p100 = scmp.eq.s32.totalorder %s16, 1
      %p101 = por %p99, %p100
      %p102 = scmp.ne.s32.totalorder %s94, %s97
      %p103 = scmp.eq.s32.totalorder %s16, 0
      %p104 = por %p102, %p103
      %p105 = scmp.ne.s32.totalorder %s94, %s97
      %p106 = scmp.eq.s32.totalorder %s21, 1
      %p107 = por %p105, %p106
      %p108 = scmp.ne.s32.totalorder %s97, %s98
      %p109 = scmp.eq.s32.totalorder %s21, 0
      %p110 = por %p108, %p109
      %p111 = scmp.ne.s32.totalorder %s97, %s98
      %p112 = scmp.eq.s32.totalorder %s22, 1
      %p113 = por %p111, %p112
      %p115 = scmp.ne.s32.totalorder %s98, %s114
      %p116 = scmp.eq.s32.totalorder %s22, 0
      %p117 = por %p115, %p116
      %p118 = scmp.le.s32.totalorder 1, %s16
      %p119 = scmp.lt.s32.totalorder %s16, 3
      %p120 = pnand %p118, %p119
      %p121 = pneg %p120
      // Predicated region
      $region9: #{tpu_custom_call.1} parent=5 // pred_check
        _
      $region10: #{tpu_custom_call.1} parent=5 // pred_check_branch
        %123 = sbr.rel (%p120) target = $region12
      $region11: #{tpu_custom_call.1} parent=5 // pred_region
        %s124 = ssub.s32 %s16, 1
        // Predicated region
        $region13: #{tpu_custom_call.1} parent=11 // pred_check
          %p125 = pneg %p63
        $region14: #{tpu_custom_call.1} parent=11 // pred_check_branch
          %127 = sbr.rel (%p125) target = $region16
        $region15: #{tpu_custom_call.1} parent=11 // pred_region
          %129 = vsyncadd [#allocation6], 0
          %s130 = sshll.u32 %s1, 4
          %s131 = int_to_ptr.hbm [resolvable:$true] %s130
          %s132 = sshll.u32 [#allocation5], 4
          %s133 = int_to_ptr.vmem [resolvable:$true] %s132
          %138 = dma.hbm_to_vmem [thread:$0]  %s131, 16384, %s133, [#allocation6], 64, 64, 4
        $region16: #{tpu_custom_call.1} parent=11 // pred_fallthru
          _
        // Predicated region
        $region17: #{tpu_custom_call.1} parent=11 // pred_check
          %p139 = pneg %p84
        $region18: #{tpu_custom_call.1} parent=11 // pred_check_branch
          %141 = sbr.rel (%p139) target = $region20
        $region19: #{tpu_custom_call.1} parent=11 // pred_region
          _
        $region20: #{tpu_custom_call.1} parent=11 // pred_fallthru
          _
      $region12: #{tpu_custom_call.1} parent=5 // pred_fallthru
        _
      %p142 = scmp.lt.s32.totalorder %s16, 2
      // Predicated region
      $region21: #{tpu_custom_call.1} parent=5 // pred_check
        %p143 = pneg %p142
      $region22: #{tpu_custom_call.1} parent=5 // pred_check_branch
        %145 = sbr.rel (%p143) target = $region24
      $region23: #{tpu_custom_call.1} parent=5 // pred_region
        // Predicated region
        $region25: #{tpu_custom_call.1} parent=23 // pred_check
          %p146 = pneg %p36
        $region26: #{tpu_custom_call.1} parent=23 // pred_check_branch
          %148 = sbr.rel (%p146) target = $region28
        $region27: #{tpu_custom_call.1} parent=23 // pred_region
          %s149 = sand.u32 %s26, 1
          %s150 = scalar_lea.sflag [#allocation3], %s149
          %s151 = sand.u32 %s26, 1
          %s152 = smul.addr %s151, 1024
          %s153 = scalar_lea.vmem [#allocation2], %s152
          %s154 = smul.u32 16, %s16
          %156 = vsyncadd %s150, 0
          %s157 = smul.addr %s154, 16
          %s158 = smul.addr %s157, 4
          %s159 = scalar_lea.hbm %s0, %s158
          %s160 = sshll.u32 %s159, 4
          %s161 = int_to_ptr.hbm [resolvable:$true] %s160
          %s162 = sshll.u32 %s153, 4
          %s163 = int_to_ptr.vmem [resolvable:$true] %s162
          %168 = dma.hbm_to_vmem [thread:$0]  %s161, 16384, %s163, %s150, 1024, 1024, 64
        $region28: #{tpu_custom_call.1} parent=23 // pred_fallthru
          _
      $region24: #{tpu_custom_call.1} parent=5 // pred_fallthru
        _
      %p169 = scmp.le.s32.totalorder 1, %s16
      %p170 = scmp.lt.s32.totalorder %s16, 3
      %p171 = pnand %p169, %p170
      %p172 = pneg %p171
      // Predicated region
      $region29: #{tpu_custom_call.1} parent=5 // pred_check
        _
      $region30: #{tpu_custom_call.1} parent=5 // pred_check_branch
        %174 = sbr.rel (%p171) target = $region32
      $region31: #{tpu_custom_call.1} parent=5 // pred_region
        %s175 = ssub.s32 %s16, 1
        %s176 = sand.u32 %s29, 1
        %s177 = scalar_lea.sflag [#allocation3], %s176
        %s178 = sand.u32 %s29, 1
        %s179 = smul.addr %s178, 1024
        %s180 = scalar_lea.vmem [#allocation2], %s179
        // Predicated region
        $region33: #{tpu_custom_call.1} parent=31 // pred_check
          %p181 = pneg %p42
        $region34: #{tpu_custom_call.1} parent=31 // pred_check_branch
          %183 = sbr.rel (%p181) target = $region36
        $region35: #{tpu_custom_call.1} parent=31 // pred_region
          %185 = dma.done %s177, 16384
        $region36: #{tpu_custom_call.1} parent=31 // pred_fallthru
          _
        // Predicated region
        $region37: #{tpu_custom_call.1} parent=31 // pred_check
          %p186 = pneg %p63
        $region38: #{tpu_custom_call.1} parent=31 // pred_check_branch
          %188 = sbr.rel (%p186) target = $region40
        $region39: #{tpu_custom_call.1} parent=31 // pred_region
          %190 = dma.done [#allocation6], 16384
        $region40: #{tpu_custom_call.1} parent=31 // pred_fallthru
          _
        %s191 = sand.u32 %s29, 1
        %s192 = scalar_lea.sflag [#allocation3], %s191
        %s193 = sand.u32 %s29, 1
        %s194 = smul.addr %s193, 1024
        %s195 = scalar_lea.vmem [#allocation2], %s194
        %p196 = pneg %p42
        %p197 = pneg %p39
        %p198 = pneg %p63
        %p199 = pneg %p60
        %p200 = pneg %p84
        %p201 = pneg %p81
        %p202 = pneg %p110
        %p203 = pneg %p107
        %s204 = sand.u32 %s97, 1
        %s205 = scalar_lea.sflag [#allocation4], %s204
        %s206 = sand.u32 %s97, 1
        %s207 = smul.addr %s206, 64
        %s208 = scalar_lea.vmem [#allocation7], %s207
        %s209 = smul.u32 16, %s21
        %s210 = smul.u32 16, %s21
        %v211 = vld [vmem:[%s180] sm:$0xff]
        %v212 = vld [vmem:[%s180 + $0x8] sm:$0xff]
        %v213 = vld [vmem:[%s180 + $0x10] sm:$0xff]
        %v214 = vld [vmem:[%s180 + $0x18] sm:$0xff]
        %v215 = vld [vmem:[%s180 + $0x20] sm:$0xff]
        %v216 = vld [vmem:[%s180 + $0x28] sm:$0xff]
        %v217 = vld [vmem:[%s180 + $0x30] sm:$0xff]
        %v218 = vld [vmem:[%s180 + $0x38] sm:$0xff]
        %v219 = vld [vmem:[%s180 + $0x40] sm:$0xff]
        %v220 = vld [vmem:[%s180 + $0x48] sm:$0xff]
        %v221 = vld [vmem:[%s180 + $0x50] sm:$0xff]
        %v222 = vld [vmem:[%s180 + $0x58] sm:$0xff]
        %v223 = vld [vmem:[%s180 + $0x60] sm:$0xff]
        %v224 = vld [vmem:[%s180 + $0x68] sm:$0xff]
        %v225 = vld [vmem:[%s180 + $0x70] sm:$0xff]
        %v226 = vld [vmem:[%s180 + $0x78] sm:$0xff]
        %v227 = vld [vmem:[%s180 + $0x80] sm:$0xff]
        %v228 = vld [vmem:[%s180 + $0x88] sm:$0xff]
        %v229 = vld [vmem:[%s180 + $0x90] sm:$0xff]
        %v230 = vld [vmem:[%s180 + $0x98] sm:$0xff]
        %v231 = vld [vmem:[%s180 + $0xa0] sm:$0xff]
        %v232 = vld [vmem:[%s180 + $0xa8] sm:$0xff]
        %v233 = vld [vmem:[%s180 + $0xb0] sm:$0xff]
        %v234 = vld [vmem:[%s180 + $0xb8] sm:$0xff]
        %v235 = vld [vmem:[%s180 + $0xc0] sm:$0xff]
        %v236 = vld [vmem:[%s180 + $0xc8] sm:$0xff]
        %v237 = vld [vmem:[%s180 + $0xd0] sm:$0xff]
        %v238 = vld [vmem:[%s180 + $0xd8] sm:$0xff]
        %v239 = vld [vmem:[%s180 + $0xe0] sm:$0xff]
        %v240 = vld [vmem:[%s180 + $0xe8] sm:$0xff]
        %v241 = vld [vmem:[%s180 + $0xf0] sm:$0xff]
        %v242 = vld [vmem:[%s180 + $0xf8] sm:$0xff]
        %v243 = vld [vmem:[%s180 + $0x100] sm:$0xff]
        %v244 = vld [vmem:[%s180 + $0x108] sm:$0xff]
        %v245 = vld [vmem:[%s180 + $0x110] sm:$0xff]
        %v246 = vld [vmem:[%s180 + $0x118] sm:$0xff]
        %v247 = vld [vmem:[%s180 + $0x120] sm:$0xff]
        %v248 = vld [vmem:[%s180 + $0x128] sm:$0xff]
        %v249 = vld [vmem:[%s180 + $0x130] sm:$0xff]
        %v250 = vld [vmem:[%s180 + $0x138] sm:$0xff]
        %v251 = vld [vmem:[%s180 + $0x140] sm:$0xff]
        %v252 = vld [vmem:[%s180 + $0x148] sm:$0xff]
        %v253 = vld [vmem:[%s180 + $0x150] sm:$0xff]
        %v254 = vld [vmem:[%s180 + $0x158] sm:$0xff]
        %v255 = vld [vmem:[%s180 + $0x160] sm:$0xff]
        %v256 = vld [vmem:[%s180 + $0x168] sm:$0xff]
        %v257 = vld [vmem:[%s180 + $0x170] sm:$0xff]
        %v258 = vld [vmem:[%s180 + $0x178] sm:$0xff]
        %v259 = vld [vmem:[%s180 + $0x180] sm:$0xff]
        %v260 = vld [vmem:[%s180 + $0x188] sm:$0xff]
        %v261 = vld [vmem:[%s180 + $0x190] sm:$0xff]
        %v262 = vld [vmem:[%s180 + $0x198] sm:$0xff]
        %v263 = vld [vmem:[%s180 + $0x1a0] sm:$0xff]
        %v264 = vld [vmem:[%s180 + $0x1a8] sm:$0xff]
        %v265 = vld [vmem:[%s180 + $0x1b0] sm:$0xff]
        %v266 = vld [vmem:[%s180 + $0x1b8] sm:$0xff]
        %v267 = vld [vmem:[%s180 + $0x1c0] sm:$0xff]
        %v268 = vld [vmem:[%s180 + $0x1c8] sm:$0xff]
        %v269 = vld [vmem:[%s180 + $0x1d0] sm:$0xff]
        %v270 = vld [vmem:[%s180 + $0x1d8] sm:$0xff]
        %v271 = vld [vmem:[%s180 + $0x1e0] sm:$0xff]
        %v272 = vld [vmem:[%s180 + $0x1e8] sm:$0xff]
        %v273 = vld [vmem:[%s180 + $0x1f0] sm:$0xff]
        %v274 = vld [vmem:[%s180 + $0x1f8] sm:$0xff]
        %v275 = vld [vmem:[%s180 + $0x200] sm:$0xff]
        %v276 = vld [vmem:[%s180 + $0x208] sm:$0xff]
        %v277 = vld [vmem:[%s180 + $0x210] sm:$0xff]
        %v278 = vld [vmem:[%s180 + $0x218] sm:$0xff]
        %v279 = vld [vmem:[%s180 + $0x220] sm:$0xff]
        %v280 = vld [vmem:[%s180 + $0x228] sm:$0xff]
        %v281 = vld [vmem:[%s180 + $0x230] sm:$0xff]
        %v282 = vld [vmem:[%s180 + $0x238] sm:$0xff]
        %v283 = vld [vmem:[%s180 + $0x240] sm:$0xff]
        %v284 = vld [vmem:[%s180 + $0x248] sm:$0xff]
        %v285 = vld [vmem:[%s180 + $0x250] sm:$0xff]
        %v286 = vld [vmem:[%s180 + $0x258] sm:$0xff]
        %v287 = vld [vmem:[%s180 + $0x260] sm:$0xff]
        %v288 = vld [vmem:[%s180 + $0x268] sm:$0xff]
        %v289 = vld [vmem:[%s180 + $0x270] sm:$0xff]
        %v290 = vld [vmem:[%s180 + $0x278] sm:$0xff]
        %v291 = vld [vmem:[%s180 + $0x280] sm:$0xff]
        %v292 = vld [vmem:[%s180 + $0x288] sm:$0xff]
        %v293 = vld [vmem:[%s180 + $0x290] sm:$0xff]
        %v294 = vld [vmem:[%s180 + $0x298] sm:$0xff]
        %v295 = vld [vmem:[%s180 + $0x2a0] sm:$0xff]
        %v296 = vld [vmem:[%s180 + $0x2a8] sm:$0xff]
        %v297 = vld [vmem:[%s180 + $0x2b0] sm:$0xff]
        %v298 = vld [vmem:[%s180 + $0x2b8] sm:$0xff]
        %v299 = vld [vmem:[%s180 + $0x2c0] sm:$0xff]
        %v300 = vld [vmem:[%s180 + $0x2c8] sm:$0xff]
        %v301 = vld [vmem:[%s180 + $0x2d0] sm:$0xff]
        %v302 = vld [vmem:[%s180 + $0x2d8] sm:$0xff]
        %v303 = vld [vmem:[%s180 + $0x2e0] sm:$0xff]
        %v304 = vld [vmem:[%s180 + $0x2e8] sm:$0xff]
        %v305 = vld [vmem:[%s180 + $0x2f0] sm:$0xff]
        %v306 = vld [vmem:[%s180 + $0x2f8] sm:$0xff]
        %v307 = vld [vmem:[%s180 + $0x300] sm:$0xff]
        %v308 = vld [vmem:[%s180 + $0x308] sm:$0xff]
        %v309 = vld [vmem:[%s180 + $0x310] sm:$0xff]
        %v310 = vld [vmem:[%s180 + $0x318] sm:$0xff]
        %v311 = vld [vmem:[%s180 + $0x320] sm:$0xff]
        %v312 = vld [vmem:[%s180 + $0x328] sm:$0xff]
        %v313 = vld [vmem:[%s180 + $0x330] sm:$0xff]
        %v314 = vld [vmem:[%s180 + $0x338] sm:$0xff]
        %v315 = vld [vmem:[%s180 + $0x340] sm:$0xff]
        %v316 = vld [vmem:[%s180 + $0x348] sm:$0xff]
        %v317 = vld [vmem:[%s180 + $0x350] sm:$0xff]
        %v318 = vld [vmem:[%s180 + $0x358] sm:$0xff]
        %v319 = vld [vmem:[%s180 + $0x360] sm:$0xff]
        %v320 = vld [vmem:[%s180 + $0x368] sm:$0xff]
        %v321 = vld [vmem:[%s180 + $0x370] sm:$0xff]
        %v322 = vld [vmem:[%s180 + $0x378] sm:$0xff]
        %v323 = vld [vmem:[%s180 + $0x380] sm:$0xff]
        %v324 = vld [vmem:[%s180 + $0x388] sm:$0xff]
        %v325 = vld [vmem:[%s180 + $0x390] sm:$0xff]
        %v326 = vld [vmem:[%s180 + $0x398] sm:$0xff]
        %v327 = vld [vmem:[%s180 + $0x3a0] sm:$0xff]
        %v328 = vld [vmem:[%s180 + $0x3a8] sm:$0xff]
        %v329 = vld [vmem:[%s180 + $0x3b0] sm:$0xff]
        %v330 = vld [vmem:[%s180 + $0x3b8] sm:$0xff]
        %v331 = vld [vmem:[%s180 + $0x3c0] sm:$0xff]
        %v332 = vld [vmem:[%s180 + $0x3c8] sm:$0xff]
        %v333 = vld [vmem:[%s180 + $0x3d0] sm:$0xff]
        %v334 = vld [vmem:[%s180 + $0x3d8] sm:$0xff]
        %v335 = vld [vmem:[%s180 + $0x3e0] sm:$0xff]
        %v336 = vld [vmem:[%s180 + $0x3e8] sm:$0xff]
        %v337 = vld [vmem:[%s180 + $0x3f0] sm:$0xff]
        %v338 = vld [vmem:[%s180 + $0x3f8] sm:$0xff]
        %v339 = vld [vmem:[#allocation5] sm:$0xf]
        %v340 = vld [vmem:[#allocation5 + $0x4] sm:$0xf]
        %v341 = vld [vmem:[#allocation5 + $0x8] sm:$0xf]
        %v342 = vld [vmem:[#allocation5 + $0xc] sm:$0xf]
        %v343 = vld [vmem:[#allocation5 + $0x10] sm:$0xf]
        %v344 = vld [vmem:[#allocation5 + $0x14] sm:$0xf]
        %v345 = vld [vmem:[#allocation5 + $0x18] sm:$0xf]
        %v346 = vld [vmem:[#allocation5 + $0x1c] sm:$0xf]
        %v347 = vld [vmem:[#allocation5 + $0x20] sm:$0xf]
        %v348 = vld [vmem:[#allocation5 + $0x24] sm:$0xf]
        %v349 = vld [vmem:[#allocation5 + $0x28] sm:$0xf]
        %v350 = vld [vmem:[#allocation5 + $0x2c] sm:$0xf]
        %v351 = vld [vmem:[#allocation5 + $0x30] sm:$0xf]
        %v352 = vld [vmem:[#allocation5 + $0x34] sm:$0xf]
        %v353 = vld [vmem:[#allocation5 + $0x38] sm:$0xf]
        %v354 = vld [vmem:[#allocation5 + $0x3c] sm:$0xf]
        %v355 = vld [vmem:[#allocation5 + $0x40] sm:$0xf]
        %v356 = vld [vmem:[#allocation5 + $0x44] sm:$0xf]
        %v357 = vld [vmem:[#allocation5 + $0x48] sm:$0xf]
        %v358 = vld [vmem:[#allocation5 + $0x4c] sm:$0xf]
        %v359 = vld [vmem:[#allocation5 + $0x50] sm:$0xf]
        %v360 = vld [vmem:[#allocation5 + $0x54] sm:$0xf]
        %v361 = vld [vmem:[#allocation5 + $0x58] sm:$0xf]
        %v362 = vld [vmem:[#allocation5 + $0x5c] sm:$0xf]
        %v363 = vld [vmem:[#allocation5 + $0x60] sm:$0xf]
        %v364 = vld [vmem:[#allocation5 + $0x64] sm:$0xf]
        %v365 = vld [vmem:[#allocation5 + $0x68] sm:$0xf]
        %v366 = vld [vmem:[#allocation5 + $0x6c] sm:$0xf]
        %v367 = vld [vmem:[#allocation5 + $0x70] sm:$0xf]
        %v368 = vld [vmem:[#allocation5 + $0x74] sm:$0xf]
        %v369 = vld [vmem:[#allocation5 + $0x78] sm:$0xf]
        %v370 = vld [vmem:[#allocation5 + $0x7c] sm:$0xf]
        %v371 = vld [vmem:[#allocation5 + $0x80] sm:$0xf]
        %v372 = vld [vmem:[#allocation5 + $0x84] sm:$0xf]
        %v373 = vld [vmem:[#allocation5 + $0x88] sm:$0xf]
        %v374 = vld [vmem:[#allocation5 + $0x8c] sm:$0xf]
        %v375 = vld [vmem:[#allocation5 + $0x90] sm:$0xf]
        %v376 = vld [vmem:[#allocation5 + $0x94] sm:$0xf]
        %v377 = vld [vmem:[#allocation5 + $0x98] sm:$0xf]
        %v378 = vld [vmem:[#allocation5 + $0x9c] sm:$0xf]
        %v379 = vld [vmem:[#allocation5 + $0xa0] sm:$0xf]
        %v380 = vld [vmem:[#allocation5 + $0xa4] sm:$0xf]
        %v381 = vld [vmem:[#allocation5 + $0xa8] sm:$0xf]
        %v382 = vld [vmem:[#allocation5 + $0xac] sm:$0xf]
        %v383 = vld [vmem:[#allocation5 + $0xb0] sm:$0xf]
        %v384 = vld [vmem:[#allocation5 + $0xb4] sm:$0xf]
        %v385 = vld [vmem:[#allocation5 + $0xb8] sm:$0xf]
        %v386 = vld [vmem:[#allocation5 + $0xbc] sm:$0xf]
        %v387 = vld [vmem:[#allocation5 + $0xc0] sm:$0xf]
        %v388 = vld [vmem:[#allocation5 + $0xc4] sm:$0xf]
        %v389 = vld [vmem:[#allocation5 + $0xc8] sm:$0xf]
        %v390 = vld [vmem:[#allocation5 + $0xcc] sm:$0xf]
        %v391 = vld [vmem:[#allocation5 + $0xd0] sm:$0xf]
        %v392 = vld [vmem:[#allocation5 + $0xd4] sm:$0xf]
        %v393 = vld [vmem:[#allocation5 + $0xd8] sm:$0xf]
        %v394 = vld [vmem:[#allocation5 + $0xdc] sm:$0xf]
        %v395 = vld [vmem:[#allocation5 + $0xe0] sm:$0xf]
        %v396 = vld [vmem:[#allocation5 + $0xe4] sm:$0xf]
        %v397 = vld [vmem:[#allocation5 + $0xe8] sm:$0xf]
        %v398 = vld [vmem:[#allocation5 + $0xec] sm:$0xf]
        %v399 = vld [vmem:[#allocation5 + $0xf0] sm:$0xf]
        %v400 = vld [vmem:[#allocation5 + $0xf4] sm:$0xf]
        %v401 = vld [vmem:[#allocation5 + $0xf8] sm:$0xf]
        %v402 = vld [vmem:[#allocation5 + $0xfc] sm:$0xf]
        %v403 = vld [vmem:[#allocation5 + $0x100] sm:$0xf]
        %v404 = vld [vmem:[#allocation5 + $0x104] sm:$0xf]
        %v405 = vld [vmem:[#allocation5 + $0x108] sm:$0xf]
        %v406 = vld [vmem:[#allocation5 + $0x10c] sm:$0xf]
        %v407 = vld [vmem:[#allocation5 + $0x110] sm:$0xf]
        %v408 = vld [vmem:[#allocation5 + $0x114] sm:$0xf]
        %v409 = vld [vmem:[#allocation5 + $0x118] sm:$0xf]
        %v410 = vld [vmem:[#allocation5 + $0x11c] sm:$0xf]
        %v411 = vld [vmem:[#allocation5 + $0x120] sm:$0xf]
        %v412 = vld [vmem:[#allocation5 + $0x124] sm:$0xf]
        %v413 = vld [vmem:[#allocation5 + $0x128] sm:$0xf]
        %v414 = vld [vmem:[#allocation5 + $0x12c] sm:$0xf]
        %v415 = vld [vmem:[#allocation5 + $0x130] sm:$0xf]
        %v416 = vld [vmem:[#allocation5 + $0x134] sm:$0xf]
        %v417 = vld [vmem:[#allocation5 + $0x138] sm:$0xf]
        %v418 = vld [vmem:[#allocation5 + $0x13c] sm:$0xf]
        %v419 = vld [vmem:[#allocation5 + $0x140] sm:$0xf]
        %v420 = vld [vmem:[#allocation5 + $0x144] sm:$0xf]
        %v421 = vld [vmem:[#allocation5 + $0x148] sm:$0xf]
        %v422 = vld [vmem:[#allocation5 + $0x14c] sm:$0xf]
        %v423 = vld [vmem:[#allocation5 + $0x150] sm:$0xf]
        %v424 = vld [vmem:[#allocation5 + $0x154] sm:$0xf]
        %v425 = vld [vmem:[#allocation5 + $0x158] sm:$0xf]
        %v426 = vld [vmem:[#allocation5 + $0x15c] sm:$0xf]
        %v427 = vld [vmem:[#allocation5 + $0x160] sm:$0xf]
        %v428 = vld [vmem:[#allocation5 + $0x164] sm:$0xf]
        %v429 = vld [vmem:[#allocation5 + $0x168] sm:$0xf]
        %v430 = vld [vmem:[#allocation5 + $0x16c] sm:$0xf]
        %v431 = vld [vmem:[#allocation5 + $0x170] sm:$0xf]
        %v432 = vld [vmem:[#allocation5 + $0x174] sm:$0xf]
        %v433 = vld [vmem:[#allocation5 + $0x178] sm:$0xf]
        %v434 = vld [vmem:[#allocation5 + $0x17c] sm:$0xf]
        %v435 = vld [vmem:[#allocation5 + $0x180] sm:$0xf]
        %v436 = vld [vmem:[#allocation5 + $0x184] sm:$0xf]
        %v437 = vld [vmem:[#allocation5 + $0x188] sm:$0xf]
        %v438 = vld [vmem:[#allocation5 + $0x18c] sm:$0xf]
        %v439 = vld [vmem:[#allocation5 + $0x190] sm:$0xf]
        %v440 = vld [vmem:[#allocation5 + $0x194] sm:$0xf]
        %v441 = vld [vmem:[#allocation5 + $0x198] sm:$0xf]
        %v442 = vld [vmem:[#allocation5 + $0x19c] sm:$0xf]
        %v443 = vld [vmem:[#allocation5 + $0x1a0] sm:$0xf]
        %v444 = vld [vmem:[#allocation5 + $0x1a4] sm:$0xf]
        %v445 = vld [vmem:[#allocation5 + $0x1a8] sm:$0xf]
        %v446 = vld [vmem:[#allocation5 + $0x1ac] sm:$0xf]
        %v447 = vld [vmem:[#allocation5 + $0x1b0] sm:$0xf]
        %v448 = vld [vmem:[#allocation5 + $0x1b4] sm:$0xf]
        %v449 = vld [vmem:[#allocation5 + $0x1b8] sm:$0xf]
        %v450 = vld [vmem:[#allocation5 + $0x1bc] sm:$0xf]
        %v451 = vld [vmem:[#allocation5 + $0x1c0] sm:$0xf]
        %v452 = vld [vmem:[#allocation5 + $0x1c4] sm:$0xf]
        %v453 = vld [vmem:[#allocation5 + $0x1c8] sm:$0xf]
        %v454 = vld [vmem:[#allocation5 + $0x1cc] sm:$0xf]
        %v455 = vld [vmem:[#allocation5 + $0x1d0] sm:$0xf]
        %v456 = vld [vmem:[#allocation5 + $0x1d4] sm:$0xf]
        %v457 = vld [vmem:[#allocation5 + $0x1d8] sm:$0xf]
        %v458 = vld [vmem:[#allocation5 + $0x1dc] sm:$0xf]
        %v459 = vld [vmem:[#allocation5 + $0x1e0] sm:$0xf]
        %v460 = vld [vmem:[#allocation5 + $0x1e4] sm:$0xf]
        %v461 = vld [vmem:[#allocation5 + $0x1e8] sm:$0xf]
        %v462 = vld [vmem:[#allocation5 + $0x1ec] sm:$0xf]
        %v463 = vld [vmem:[#allocation5 + $0x1f0] sm:$0xf]
        %v464 = vld [vmem:[#allocation5 + $0x1f4] sm:$0xf]
        %v465 = vld [vmem:[#allocation5 + $0x1f8] sm:$0xf]
        %v466 = vld [vmem:[#allocation5 + $0x1fc] sm:$0xf]
        %v467 = vld [vmem:[#allocation5 + $0x200] sm:$0xf]
        %v468 = vld [vmem:[#allocation5 + $0x204] sm:$0xf]
        %v469 = vld [vmem:[#allocation5 + $0x208] sm:$0xf]
        %v470 = vld [vmem:[#allocation5 + $0x20c] sm:$0xf]
        %v471 = vld [vmem:[#allocation5 + $0x210] sm:$0xf]
        %v472 = vld [vmem:[#allocation5 + $0x214] sm:$0xf]
        %v473 = vld [vmem:[#allocation5 + $0x218] sm:$0xf]
        %v474 = vld [vmem:[#allocation5 + $0x21c] sm:$0xf]
        %v475 = vld [vmem:[#allocation5 + $0x220] sm:$0xf]
        %v476 = vld [vmem:[#allocation5 + $0x224] sm:$0xf]
        %v477 = vld [vmem:[#allocation5 + $0x228] sm:$0xf]
        %v478 = vld [vmem:[#allocation5 + $0x22c] sm:$0xf]
        %v479 = vld [vmem:[#allocation5 + $0x230] sm:$0xf]
        %v480 = vld [vmem:[#allocation5 + $0x234] sm:$0xf]
        %v481 = vld [vmem:[#allocation5 + $0x238] sm:$0xf]
        %v482 = vld [vmem:[#allocation5 + $0x23c] sm:$0xf]
        %v483 = vld [vmem:[#allocation5 + $0x240] sm:$0xf]
        %v484 = vld [vmem:[#allocation5 + $0x244] sm:$0xf]
        %v485 = vld [vmem:[#allocation5 + $0x248] sm:$0xf]
        %v486 = vld [vmem:[#allocation5 + $0x24c] sm:$0xf]
        %v487 = vld [vmem:[#allocation5 + $0x250] sm:$0xf]
        %v488 = vld [vmem:[#allocation5 + $0x254] sm:$0xf]
        %v489 = vld [vmem:[#allocation5 + $0x258] sm:$0xf]
        %v490 = vld [vmem:[#allocation5 + $0x25c] sm:$0xf]
        %v491 = vld [vmem:[#allocation5 + $0x260] sm:$0xf]
        %v492 = vld [vmem:[#allocation5 + $0x264] sm:$0xf]
        %v493 = vld [vmem:[#allocation5 + $0x268] sm:$0xf]
        %v494 = vld [vmem:[#allocation5 + $0x26c] sm:$0xf]
        %v495 = vld [vmem:[#allocation5 + $0x270] sm:$0xf]
        %v496 = vld [vmem:[#allocation5 + $0x274] sm:$0xf]
        %v497 = vld [vmem:[#allocation5 + $0x278] sm:$0xf]
        %v498 = vld [vmem:[#allocation5 + $0x27c] sm:$0xf]
        %v499 = vld [vmem:[#allocation5 + $0x280] sm:$0xf]
        %v500 = vld [vmem:[#allocation5 + $0x284] sm:$0xf]
        %v501 = vld [vmem:[#allocation5 + $0x288] sm:$0xf]
        %v502 = vld [vmem:[#allocation5 + $0x28c] sm:$0xf]
        %v503 = vld [vmem:[#allocation5 + $0x290] sm:$0xf]
        %v504 = vld [vmem:[#allocation5 + $0x294] sm:$0xf]
        %v505 = vld [vmem:[#allocation5 + $0x298] sm:$0xf]
        %v506 = vld [vmem:[#allocation5 + $0x29c] sm:$0xf]
        %v507 = vld [vmem:[#allocation5 + $0x2a0] sm:$0xf]
        %v508 = vld [vmem:[#allocation5 + $0x2a4] sm:$0xf]
        %v509 = vld [vmem:[#allocation5 + $0x2a8] sm:$0xf]
        %v510 = vld [vmem:[#allocation5 + $0x2ac] sm:$0xf]
        %v511 = vld [vmem:[#allocation5 + $0x2b0] sm:$0xf]
        %v512 = vld [vmem:[#allocation5 + $0x2b4] sm:$0xf]
        %v513 = vld [vmem:[#allocation5 + $0x2b8] sm:$0xf]
        %v514 = vld [vmem:[#allocation5 + $0x2bc] sm:$0xf]
        %v515 = vld [vmem:[#allocation5 + $0x2c0] sm:$0xf]
        %v516 = vld [vmem:[#allocation5 + $0x2c4] sm:$0xf]
        %v517 = vld [vmem:[#allocation5 + $0x2c8] sm:$0xf]
        %v518 = vld [vmem:[#allocation5 + $0x2cc] sm:$0xf]
        %v519 = vld [vmem:[#allocation5 + $0x2d0] sm:$0xf]
        %v520 = vld [vmem:[#allocation5 + $0x2d4] sm:$0xf]
        %v521 = vld [vmem:[#allocation5 + $0x2d8] sm:$0xf]
        %v522 = vld [vmem:[#allocation5 + $0x2dc] sm:$0xf]
        %v523 = vld [vmem:[#allocation5 + $0x2e0] sm:$0xf]
        %v524 = vld [vmem:[#allocation5 + $0x2e4] sm:$0xf]
        %v525 = vld [vmem:[#allocation5 + $0x2e8] sm:$0xf]
        %v526 = vld [vmem:[#allocation5 + $0x2ec] sm:$0xf]
        %v527 = vld [vmem:[#allocation5 + $0x2f0] sm:$0xf]
        %v528 = vld [vmem:[#allocation5 + $0x2f4] sm:$0xf]
        %v529 = vld [vmem:[#allocation5 + $0x2f8] sm:$0xf]
        %v530 = vld [vmem:[#allocation5 + $0x2fc] sm:$0xf]
        %v531 = vld [vmem:[#allocation5 + $0x300] sm:$0xf]
        %v532 = vld [vmem:[#allocation5 + $0x304] sm:$0xf]
        %v533 = vld [vmem:[#allocation5 + $0x308] sm:$0xf]
        %v534 = vld [vmem:[#allocation5 + $0x30c] sm:$0xf]
        %v535 = vld [vmem:[#allocation5 + $0x310] sm:$0xf]
        %v536 = vld [vmem:[#allocation5 + $0x314] sm:$0xf]
        %v537 = vld [vmem:[#allocation5 + $0x318] sm:$0xf]
        %v538 = vld [vmem:[#allocation5 + $0x31c] sm:$0xf]
        %v539 = vld [vmem:[#allocation5 + $0x320] sm:$0xf]
        %v540 = vld [vmem:[#allocation5 + $0x324] sm:$0xf]
        %v541 = vld [vmem:[#allocation5 + $0x328] sm:$0xf]
        %v542 = vld [vmem:[#allocation5 + $0x32c] sm:$0xf]
        %v543 = vld [vmem:[#allocation5 + $0x330] sm:$0xf]
        %v544 = vld [vmem:[#allocation5 + $0x334] sm:$0xf]
        %v545 = vld [vmem:[#allocation5 + $0x338] sm:$0xf]
        %v546 = vld [vmem:[#allocation5 + $0x33c] sm:$0xf]
        %v547 = vld [vmem:[#allocation5 + $0x340] sm:$0xf]
        %v548 = vld [vmem:[#allocation5 + $0x344] sm:$0xf]
        %v549 = vld [vmem:[#allocation5 + $0x348] sm:$0xf]
        %v550 = vld [vmem:[#allocation5 + $0x34c] sm:$0xf]
        %v551 = vld [vmem:[#allocation5 + $0x350] sm:$0xf]
        %v552 = vld [vmem:[#allocation5 + $0x354] sm:$0xf]
        %v553 = vld [vmem:[#allocation5 + $0x358] sm:$0xf]
        %v554 = vld [vmem:[#allocation5 + $0x35c] sm:$0xf]
        %v555 = vld [vmem:[#allocation5 + $0x360] sm:$0xf]
        %v556 = vld [vmem:[#allocation5 + $0x364] sm:$0xf]
        %v557 = vld [vmem:[#allocation5 + $0x368] sm:$0xf]
        %v558 = vld [vmem:[#allocation5 + $0x36c] sm:$0xf]
        %v559 = vld [vmem:[#allocation5 + $0x370] sm:$0xf]
        %v560 = vld [vmem:[#allocation5 + $0x374] sm:$0xf]
        %v561 = vld [vmem:[#allocation5 + $0x378] sm:$0xf]
        %v562 = vld [vmem:[#allocation5 + $0x37c] sm:$0xf]
        %v563 = vld [vmem:[#allocation5 + $0x380] sm:$0xf]
        %v564 = vld [vmem:[#allocation5 + $0x384] sm:$0xf]
        %v565 = vld [vmem:[#allocation5 + $0x388] sm:$0xf]
        %v566 = vld [vmem:[#allocation5 + $0x38c] sm:$0xf]
        %v567 = vld [vmem:[#allocation5 + $0x390] sm:$0xf]
        %v568 = vld [vmem:[#allocation5 + $0x394] sm:$0xf]
        %v569 = vld [vmem:[#allocation5 + $0x398] sm:$0xf]
        %v570 = vld [vmem:[#allocation5 + $0x39c] sm:$0xf]
        %v571 = vld [vmem:[#allocation5 + $0x3a0] sm:$0xf]
        %v572 = vld [vmem:[#allocation5 + $0x3a4] sm:$0xf]
        %v573 = vld [vmem:[#allocation5 + $0x3a8] sm:$0xf]
        %v574 = vld [vmem:[#allocation5 + $0x3ac] sm:$0xf]
        %v575 = vld [vmem:[#allocation5 + $0x3b0] sm:$0xf]
        %v576 = vld [vmem:[#allocation5 + $0x3b4] sm:$0xf]
        %v577 = vld [vmem:[#allocation5 + $0x3b8] sm:$0xf]
        %v578 = vld [vmem:[#allocation5 + $0x3bc] sm:$0xf]
        %v579 = vld [vmem:[#allocation5 + $0x3c0] sm:$0xf]
        %v580 = vld [vmem:[#allocation5 + $0x3c4] sm:$0xf]
        %v581 = vld [vmem:[#allocation5 + $0x3c8] sm:$0xf]
        %v582 = vld [vmem:[#allocation5 + $0x3cc] sm:$0xf]
        %v583 = vld [vmem:[#allocation5 + $0x3d0] sm:$0xf]
        %v584 = vld [vmem:[#allocation5 + $0x3d4] sm:$0xf]
        %v585 = vld [vmem:[#allocation5 + $0x3d8] sm:$0xf]
        %v586 = vld [vmem:[#allocation5 + $0x3dc] sm:$0xf]
        %v587 = vld [vmem:[#allocation5 + $0x3e0] sm:$0xf]
        %v588 = vld [vmem:[#allocation5 + $0x3e4] sm:$0xf]
        %v589 = vld [vmem:[#allocation5 + $0x3e8] sm:$0xf]
        %v590 = vld [vmem:[#allocation5 + $0x3ec] sm:$0xf]
        %v591 = vld [vmem:[#allocation5 + $0x3f0] sm:$0xf]
        %v592 = vld [vmem:[#allocation5 + $0x3f4] sm:$0xf]
        %v593 = vld [vmem:[#allocation5 + $0x3f8] sm:$0xf]
        %v594 = vld [vmem:[#allocation5 + $0x3fc] sm:$0xf]
        %v595 = vld [vmem:[%s2] sm:$0x1]
        %v597 = vperm.slane %v595, 0
        %v727 = vunpack.c.l.b16 %v211
        %v728 = vunpack.c.h.b16 %v211
        %v729 = vunpack.c.l.b16 %v212
        %v730 = vunpack.c.h.b16 %v212
        %v731 = vunpack.c.l.b16 %v213
        %v732 = vunpack.c.h.b16 %v213
        %v733 = vunpack.c.l.b16 %v214
        %v734 = vunpack.c.h.b16 %v214
        %v735 = vunpack.c.l.b16 %v215
        %v736 = vunpack.c.h.b16 %v215
        %v737 = vunpack.c.l.b16 %v216
        %v738 = vunpack.c.h.b16 %v216
        %v739 = vunpack.c.l.b16 %v217
        %v740 = vunpack.c.h.b16 %v217
        %v741 = vunpack.c.l.b16 %v218
        %v742 = vunpack.c.h.b16 %v218
        %v743 = vunpack.c.l.b16 %v219
        %v744 = vunpack.c.h.b16 %v219
        %v745 = vunpack.c.l.b16 %v220
        %v746 = vunpack.c.h.b16 %v220
        %v747 = vunpack.c.l.b16 %v221
        %v748 = vunpack.c.h.b16 %v221
        %v749 = vunpack.c.l.b16 %v222
        %v750 = vunpack.c.h.b16 %v222
        %v751 = vunpack.c.l.b16 %v223
        %v752 = vunpack.c.h.b16 %v223
        %v753 = vunpack.c.l.b16 %v224
        %v754 = vunpack.c.h.b16 %v224
        %v755 = vunpack.c.l.b16 %v225
        %v756 = vunpack.c.h.b16 %v225
        %v757 = vunpack.c.l.b16 %v226
        %v758 = vunpack.c.h.b16 %v226
        %v759 = vunpack.c.l.b16 %v227
        %v760 = vunpack.c.h.b16 %v227
        %v761 = vunpack.c.l.b16 %v228
        %v762 = vunpack.c.h.b16 %v228
        %v763 = vunpack.c.l.b16 %v229
        %v764 = vunpack.c.h.b16 %v229
        %v765 = vunpack.c.l.b16 %v230
        %v766 = vunpack.c.h.b16 %v230
        %v767 = vunpack.c.l.b16 %v231
        %v768 = vunpack.c.h.b16 %v231
        %v769 = vunpack.c.l.b16 %v232
        %v770 = vunpack.c.h.b16 %v232
        %v771 = vunpack.c.l.b16 %v233
        %v772 = vunpack.c.h.b16 %v233
        %v773 = vunpack.c.l.b16 %v234
        %v774 = vunpack.c.h.b16 %v234
        %v775 = vunpack.c.l.b16 %v235
        %v776 = vunpack.c.h.b16 %v235
        %v777 = vunpack.c.l.b16 %v236
        %v778 = vunpack.c.h.b16 %v236
        %v779 = vunpack.c.l.b16 %v237
        %v780 = vunpack.c.h.b16 %v237
        %v781 = vunpack.c.l.b16 %v238
        %v782 = vunpack.c.h.b16 %v238
        %v783 = vunpack.c.l.b16 %v239
        %v784 = vunpack.c.h.b16 %v239
        %v785 = vunpack.c.l.b16 %v240
        %v786 = vunpack.c.h.b16 %v240
        %v787 = vunpack.c.l.b16 %v241
        %v788 = vunpack.c.h.b16 %v241
        %v789 = vunpack.c.l.b16 %v242
        %v790 = vunpack.c.h.b16 %v242
        %v791 = vunpack.c.l.b16 %v243
        %v792 = vunpack.c.h.b16 %v243
        %v793 = vunpack.c.l.b16 %v244
        %v794 = vunpack.c.h.b16 %v244
        %v795 = vunpack.c.l.b16 %v245
        %v796 = vunpack.c.h.b16 %v245
        %v797 = vunpack.c.l.b16 %v246
        %v798 = vunpack.c.h.b16 %v246
        %v799 = vunpack.c.l.b16 %v247
        %v800 = vunpack.c.h.b16 %v247
        %v801 = vunpack.c.l.b16 %v248
        %v802 = vunpack.c.h.b16 %v248
        %v803 = vunpack.c.l.b16 %v249
        %v804 = vunpack.c.h.b16 %v249
        %v805 = vunpack.c.l.b16 %v250
        %v806 = vunpack.c.h.b16 %v250
        %v807 = vunpack.c.l.b16 %v251
        %v808 = vunpack.c.h.b16 %v251
        %v809 = vunpack.c.l.b16 %v252
        %v810 = vunpack.c.h.b16 %v252
        %v811 = vunpack.c.l.b16 %v253
        %v812 = vunpack.c.h.b16 %v253
        %v813 = vunpack.c.l.b16 %v254
        %v814 = vunpack.c.h.b16 %v254
        %v815 = vunpack.c.l.b16 %v255
        %v816 = vunpack.c.h.b16 %v255
        %v817 = vunpack.c.l.b16 %v256
        %v818 = vunpack.c.h.b16 %v256
        %v819 = vunpack.c.l.b16 %v257
        %v820 = vunpack.c.h.b16 %v257
        %v821 = vunpack.c.l.b16 %v258
        %v822 = vunpack.c.h.b16 %v258
        %v823 = vunpack.c.l.b16 %v259
        %v824 = vunpack.c.h.b16 %v259
        %v825 = vunpack.c.l.b16 %v260
        %v826 = vunpack.c.h.b16 %v260
        %v827 = vunpack.c.l.b16 %v261
        %v828 = vunpack.c.h.b16 %v261
        %v829 = vunpack.c.l.b16 %v262
        %v830 = vunpack.c.h.b16 %v262
        %v831 = vunpack.c.l.b16 %v263
        %v832 = vunpack.c.h.b16 %v263
        %v833 = vunpack.c.l.b16 %v264
        %v834 = vunpack.c.h.b16 %v264
        %v835 = vunpack.c.l.b16 %v265
        %v836 = vunpack.c.h.b16 %v265
        %v837 = vunpack.c.l.b16 %v266
        %v838 = vunpack.c.h.b16 %v266
        %v839 = vunpack.c.l.b16 %v267
        %v840 = vunpack.c.h.b16 %v267
        %v841 = vunpack.c.l.b16 %v268
        %v842 = vunpack.c.h.b16 %v268
        %v843 = vunpack.c.l.b16 %v269
        %v844 = vunpack.c.h.b16 %v269
        %v845 = vunpack.c.l.b16 %v270
        %v846 = vunpack.c.h.b16 %v270
        %v847 = vunpack.c.l.b16 %v271
        %v848 = vunpack.c.h.b16 %v271
        %v849 = vunpack.c.l.b16 %v272
        %v850 = vunpack.c.h.b16 %v272
        %v851 = vunpack.c.l.b16 %v273
        %v852 = vunpack.c.h.b16 %v273
        %v853 = vunpack.c.l.b16 %v274
        %v854 = vunpack.c.h.b16 %v274
        %v855 = vunpack.c.l.b16 %v275
        %v856 = vunpack.c.h.b16 %v275
        %v857 = vunpack.c.l.b16 %v276
        %v858 = vunpack.c.h.b16 %v276
        %v859 = vunpack.c.l.b16 %v277
        %v860 = vunpack.c.h.b16 %v277
        %v861 = vunpack.c.l.b16 %v278
        %v862 = vunpack.c.h.b16 %v278
        %v863 = vunpack.c.l.b16 %v279
        %v864 = vunpack.c.h.b16 %v279
        %v865 = vunpack.c.l.b16 %v280
        %v866 = vunpack.c.h.b16 %v280
        %v867 = vunpack.c.l.b16 %v281
        %v868 = vunpack.c.h.b16 %v281
        %v869 = vunpack.c.l.b16 %v282
        %v870 = vunpack.c.h.b16 %v282
        %v871 = vunpack.c.l.b16 %v283
        %v872 = vunpack.c.h.b16 %v283
        %v873 = vunpack.c.l.b16 %v284
        %v874 = vunpack.c.h.b16 %v284
        %v875 = vunpack.c.l.b16 %v285
        %v876 = vunpack.c.h.b16 %v285
        %v877 = vunpack.c.l.b16 %v286
        %v878 = vunpack.c.h.b16 %v286
        %v879 = vunpack.c.l.b16 %v287
        %v880 = vunpack.c.h.b16 %v287
        %v881 = vunpack.c.l.b16 %v288
        %v882 = vunpack.c.h.b16 %v288
        %v883 = vunpack.c.l.b16 %v289
        %v884 = vunpack.c.h.b16 %v289
        %v885 = vunpack.c.l.b16 %v290
        %v886 = vunpack.c.h.b16 %v290
        %v887 = vunpack.c.l.b16 %v291
        %v888 = vunpack.c.h.b16 %v291
        %v889 = vunpack.c.l.b16 %v292
        %v890 = vunpack.c.h.b16 %v292
        %v891 = vunpack.c.l.b16 %v293
        %v892 = vunpack.c.h.b16 %v293
        %v893 = vunpack.c.l.b16 %v294
        %v894 = vunpack.c.h.b16 %v294
        %v895 = vunpack.c.l.b16 %v295
        %v896 = vunpack.c.h.b16 %v295
        %v897 = vunpack.c.l.b16 %v296
        %v898 = vunpack.c.h.b16 %v296
        %v899 = vunpack.c.l.b16 %v297
        %v900 = vunpack.c.h.b16 %v297
        %v901 = vunpack.c.l.b16 %v298
        %v902 = vunpack.c.h.b16 %v298
        %v903 = vunpack.c.l.b16 %v299
        %v904 = vunpack.c.h.b16 %v299
        %v905 = vunpack.c.l.b16 %v300
        %v906 = vunpack.c.h.b16 %v300
        %v907 = vunpack.c.l.b16 %v301
        %v908 = vunpack.c.h.b16 %v301
        %v909 = vunpack.c.l.b16 %v302
        %v910 = vunpack.c.h.b16 %v302
        %v911 = vunpack.c.l.b16 %v303
        %v912 = vunpack.c.h.b16 %v303
        %v913 = vunpack.c.l.b16 %v304
        %v914 = vunpack.c.h.b16 %v304
        %v915 = vunpack.c.l.b16 %v305
        %v916 = vunpack.c.h.b16 %v305
        %v917 = vunpack.c.l.b16 %v306
        %v918 = vunpack.c.h.b16 %v306
        %v919 = vunpack.c.l.b16 %v307
        %v920 = vunpack.c.h.b16 %v307
        %v921 = vunpack.c.l.b16 %v308
        %v922 = vunpack.c.h.b16 %v308
        %v923 = vunpack.c.l.b16 %v309
        %v924 = vunpack.c.h.b16 %v309
        %v925 = vunpack.c.l.b16 %v310
        %v926 = vunpack.c.h.b16 %v310
        %v927 = vunpack.c.l.b16 %v311
        %v928 = vunpack.c.h.b16 %v311
        %v929 = vunpack.c.l.b16 %v312
        %v930 = vunpack.c.h.b16 %v312
        %v931 = vunpack.c.l.b16 %v313
        %v932 = vunpack.c.h.b16 %v313
        %v933 = vunpack.c.l.b16 %v314
        %v934 = vunpack.c.h.b16 %v314
        %v935 = vunpack.c.l.b16 %v315
        %v936 = vunpack.c.h.b16 %v315
        %v937 = vunpack.c.l.b16 %v316
        %v938 = vunpack.c.h.b16 %v316
        %v939 = vunpack.c.l.b16 %v317
        %v940 = vunpack.c.h.b16 %v317
        %v941 = vunpack.c.l.b16 %v318
        %v942 = vunpack.c.h.b16 %v318
        %v943 = vunpack.c.l.b16 %v319
        %v944 = vunpack.c.h.b16 %v319
        %v945 = vunpack.c.l.b16 %v320
        %v946 = vunpack.c.h.b16 %v320
        %v947 = vunpack.c.l.b16 %v321
        %v948 = vunpack.c.h.b16 %v321
        %v949 = vunpack.c.l.b16 %v322
        %v950 = vunpack.c.h.b16 %v322
        %v951 = vunpack.c.l.b16 %v323
        %v952 = vunpack.c.h.b16 %v323
        %v953 = vunpack.c.l.b16 %v324
        %v954 = vunpack.c.h.b16 %v324
        %v955 = vunpack.c.l.b16 %v325
        %v956 = vunpack.c.h.b16 %v325
        %v957 = vunpack.c.l.b16 %v326
        %v958 = vunpack.c.h.b16 %v326
        %v959 = vunpack.c.l.b16 %v327
        %v960 = vunpack.c.h.b16 %v327
        %v961 = vunpack.c.l.b16 %v328
        %v962 = vunpack.c.h.b16 %v328
        %v963 = vunpack.c.l.b16 %v329
        %v964 = vunpack.c.h.b16 %v329
        %v965 = vunpack.c.l.b16 %v330
        %v966 = vunpack.c.h.b16 %v330
        %v967 = vunpack.c.l.b16 %v331
        %v968 = vunpack.c.h.b16 %v331
        %v969 = vunpack.c.l.b16 %v332
        %v970 = vunpack.c.h.b16 %v332
        %v971 = vunpack.c.l.b16 %v333
        %v972 = vunpack.c.h.b16 %v333
        %v973 = vunpack.c.l.b16 %v334
        %v974 = vunpack.c.h.b16 %v334
        %v975 = vunpack.c.l.b16 %v335
        %v976 = vunpack.c.h.b16 %v335
        %v977 = vunpack.c.l.b16 %v336
        %v978 = vunpack.c.h.b16 %v336
        %v979 = vunpack.c.l.b16 %v337
        %v980 = vunpack.c.h.b16 %v337
        %v981 = vunpack.c.l.b16 %v338
        %v982 = vunpack.c.h.b16 %v338
        %v983 = vpack.c.b16 %v743, %v727
        %v984 = vpack.c.b16 %v744, %v728
        %v985 = vpack.c.b16 %v745, %v729
        %v986 = vpack.c.b16 %v746, %v730
        %v987 = vpack.c.b16 %v747, %v731
        %v988 = vpack.c.b16 %v748, %v732
        %v989 = vpack.c.b16 %v749, %v733
        %v990 = vpack.c.b16 %v750, %v734
        %v991 = vpack.c.b16 %v751, %v735
        %v992 = vpack.c.b16 %v752, %v736
        %v993 = vpack.c.b16 %v753, %v737
        %v994 = vpack.c.b16 %v754, %v738
        %v995 = vpack.c.b16 %v755, %v739
        %v996 = vpack.c.b16 %v756, %v740
        %v997 = vpack.c.b16 %v757, %v741
        %v998 = vpack.c.b16 %v758, %v742
        %v999 = vpack.c.b16 %v775, %v759
        %v1000 = vpack.c.b16 %v776, %v760
        %v1001 = vpack.c.b16 %v777, %v761
        %v1002 = vpack.c.b16 %v778, %v762
        %v1003 = vpack.c.b16 %v779, %v763
        %v1004 = vpack.c.b16 %v780, %v764
        %v1005 = vpack.c.b16 %v781, %v765
        %v1006 = vpack.c.b16 %v782, %v766
        %v1007 = vpack.c.b16 %v783, %v767
        %v1008 = vpack.c.b16 %v784, %v768
        %v1009 = vpack.c.b16 %v785, %v769
        %v1010 = vpack.c.b16 %v786, %v770
        %v1011 = vpack.c.b16 %v787, %v771
        %v1012 = vpack.c.b16 %v788, %v772
        %v1013 = vpack.c.b16 %v789, %v773
        %v1014 = vpack.c.b16 %v790, %v774
        %v1015 = vpack.c.b16 %v807, %v791
        %v1016 = vpack.c.b16 %v808, %v792
        %v1017 = vpack.c.b16 %v809, %v793
        %v1018 = vpack.c.b16 %v810, %v794
        %v1019 = vpack.c.b16 %v811, %v795
        %v1020 = vpack.c.b16 %v812, %v796
        %v1021 = vpack.c.b16 %v813, %v797
        %v1022 = vpack.c.b16 %v814, %v798
        %v1023 = vpack.c.b16 %v815, %v799
        %v1024 = vpack.c.b16 %v816, %v800
        %v1025 = vpack.c.b16 %v817, %v801
        %v1026 = vpack.c.b16 %v818, %v802
        %v1027 = vpack.c.b16 %v819, %v803
        %v1028 = vpack.c.b16 %v820, %v804
        %v1029 = vpack.c.b16 %v821, %v805
        %v1030 = vpack.c.b16 %v822, %v806
        %v1031 = vpack.c.b16 %v839, %v823
        %v1032 = vpack.c.b16 %v840, %v824
        %v1033 = vpack.c.b16 %v841, %v825
        %v1034 = vpack.c.b16 %v842, %v826
        %v1035 = vpack.c.b16 %v843, %v827
        %v1036 = vpack.c.b16 %v844, %v828
        %v1037 = vpack.c.b16 %v845, %v829
        %v1038 = vpack.c.b16 %v846, %v830
        %v1039 = vpack.c.b16 %v847, %v831
        %v1040 = vpack.c.b16 %v848, %v832
        %v1041 = vpack.c.b16 %v849, %v833
        %v1042 = vpack.c.b16 %v850, %v834
        %v1043 = vpack.c.b16 %v851, %v835
        %v1044 = vpack.c.b16 %v852, %v836
        %v1045 = vpack.c.b16 %v853, %v837
        %v1046 = vpack.c.b16 %v854, %v838
        %v1047 = vpack.c.b16 %v871, %v855
        %v1048 = vpack.c.b16 %v872, %v856
        %v1049 = vpack.c.b16 %v873, %v857
        %v1050 = vpack.c.b16 %v874, %v858
        %v1051 = vpack.c.b16 %v875, %v859
        %v1052 = vpack.c.b16 %v876, %v860
        %v1053 = vpack.c.b16 %v877, %v861
        %v1054 = vpack.c.b16 %v878, %v862
        %v1055 = vpack.c.b16 %v879, %v863
        %v1056 = vpack.c.b16 %v880, %v864
        %v1057 = vpack.c.b16 %v881, %v865
        %v1058 = vpack.c.b16 %v882, %v866
        %v1059 = vpack.c.b16 %v883, %v867
        %v1060 = vpack.c.b16 %v884, %v868
        %v1061 = vpack.c.b16 %v885, %v869
        %v1062 = vpack.c.b16 %v886, %v870
        %v1063 = vpack.c.b16 %v903, %v887
        %v1064 = vpack.c.b16 %v904, %v888
        %v1065 = vpack.c.b16 %v905, %v889
        %v1066 = vpack.c.b16 %v906, %v890
        %v1067 = vpack.c.b16 %v907, %v891
        %v1068 = vpack.c.b16 %v908, %v892
        %v1069 = vpack.c.b16 %v909, %v893
        %v1070 = vpack.c.b16 %v910, %v894
        %v1071 = vpack.c.b16 %v911, %v895
        %v1072 = vpack.c.b16 %v912, %v896
        %v1073 = vpack.c.b16 %v913, %v897
        %v1074 = vpack.c.b16 %v914, %v898
        %v1075 = vpack.c.b16 %v915, %v899
        %v1076 = vpack.c.b16 %v916, %v900
        %v1077 = vpack.c.b16 %v917, %v901
        %v1078 = vpack.c.b16 %v918, %v902
        %v1079 = vpack.c.b16 %v935, %v919
        %v1080 = vpack.c.b16 %v936, %v920
        %v1081 = vpack.c.b16 %v937, %v921
        %v1082 = vpack.c.b16 %v938, %v922
        %v1083 = vpack.c.b16 %v939, %v923
        %v1084 = vpack.c.b16 %v940, %v924
        %v1085 = vpack.c.b16 %v941, %v925
        %v1086 = vpack.c.b16 %v942, %v926
        %v1087 = vpack.c.b16 %v943, %v927
        %v1088 = vpack.c.b16 %v944, %v928
        %v1089 = vpack.c.b16 %v945, %v929
        %v1090 = vpack.c.b16 %v946, %v930
        %v1091 = vpack.c.b16 %v947, %v931
        %v1092 = vpack.c.b16 %v948, %v932
        %v1093 = vpack.c.b16 %v949, %v933
        %v1094 = vpack.c.b16 %v950, %v934
        %v1095 = vpack.c.b16 %v967, %v951
        %v1096 = vpack.c.b16 %v968, %v952
        %v1097 = vpack.c.b16 %v969, %v953
        %v1098 = vpack.c.b16 %v970, %v954
        %v1099 = vpack.c.b16 %v971, %v955
        %v1100 = vpack.c.b16 %v972, %v956
        %v1101 = vpack.c.b16 %v973, %v957
        %v1102 = vpack.c.b16 %v974, %v958
        %v1103 = vpack.c.b16 %v975, %v959
        %v1104 = vpack.c.b16 %v976, %v960
        %v1105 = vpack.c.b16 %v977, %v961
        %v1106 = vpack.c.b16 %v978, %v962
        %v1107 = vpack.c.b16 %v979, %v963
        %v1108 = vpack.c.b16 %v980, %v964
        %v1109 = vpack.c.b16 %v981, %v965
        %v1110 = vpack.c.b16 %v982, %v966
        %v1495 = vunpack.c.l.b16 %v339
        %v1496 = vunpack.c.l.b16 %v340
        %v1497 = vunpack.c.l.b16 %v341
        %v1498 = vunpack.c.l.b16 %v342
        %v1499 = vunpack.c.l.b16 %v343
        %v1500 = vunpack.c.l.b16 %v344
        %v1501 = vunpack.c.l.b16 %v345
        %v1502 = vunpack.c.l.b16 %v346
        %v1503 = vunpack.c.l.b16 %v347
        %v1504 = vunpack.c.l.b16 %v348
        %v1505 = vunpack.c.l.b16 %v349
        %v1506 = vunpack.c.l.b16 %v350
        %v1507 = vunpack.c.l.b16 %v351
        %v1508 = vunpack.c.l.b16 %v352
        %v1509 = vunpack.c.l.b16 %v353
        %v1510 = vunpack.c.l.b16 %v354
        %v1511 = vunpack.c.l.b16 %v355
        %v1512 = vunpack.c.l.b16 %v356
        %v1513 = vunpack.c.l.b16 %v357
        %v1514 = vunpack.c.l.b16 %v358
        %v1515 = vunpack.c.l.b16 %v359
        %v1516 = vunpack.c.l.b16 %v360
        %v1517 = vunpack.c.l.b16 %v361
        %v1518 = vunpack.c.l.b16 %v362
        %v1519 = vunpack.c.l.b16 %v363
        %v1520 = vunpack.c.l.b16 %v364
        %v1521 = vunpack.c.l.b16 %v365
        %v1522 = vunpack.c.l.b16 %v366
        %v1523 = vunpack.c.l.b16 %v367
        %v1524 = vunpack.c.l.b16 %v368
        %v1525 = vunpack.c.l.b16 %v369
        %v1526 = vunpack.c.l.b16 %v370
        %v1527 = vunpack.c.l.b16 %v371
        %v1528 = vunpack.c.l.b16 %v372
        %v1529 = vunpack.c.l.b16 %v373
        %v1530 = vunpack.c.l.b16 %v374
        %v1531 = vunpack.c.l.b16 %v375
        %v1532 = vunpack.c.l.b16 %v376
        %v1533 = vunpack.c.l.b16 %v377
        %v1534 = vunpack.c.l.b16 %v378
        %v1535 = vunpack.c.l.b16 %v379
        %v1536 = vunpack.c.l.b16 %v380
        %v1537 = vunpack.c.l.b16 %v381
        %v1538 = vunpack.c.l.b16 %v382
        %v1539 = vunpack.c.l.b16 %v383
        %v1540 = vunpack.c.l.b16 %v384
        %v1541 = vunpack.c.l.b16 %v385
        %v1542 = vunpack.c.l.b16 %v386
        %v1543 = vunpack.c.l.b16 %v387
        %v1544 = vunpack.c.l.b16 %v388
        %v1545 = vunpack.c.l.b16 %v389
        %v1546 = vunpack.c.l.b16 %v390
        %v1547 = vunpack.c.l.b16 %v391
        %v1548 = vunpack.c.l.b16 %v392
        %v1549 = vunpack.c.l.b16 %v393
        %v1550 = vunpack.c.l.b16 %v394
        %v1551 = vunpack.c.l.b16 %v395
        %v1552 = vunpack.c.l.b16 %v396
        %v1553 = vunpack.c.l.b16 %v397
        %v1554 = vunpack.c.l.b16 %v398
        %v1555 = vunpack.c.l.b16 %v399
        %v1556 = vunpack.c.l.b16 %v400
        %v1557 = vunpack.c.l.b16 %v401
        %v1558 = vunpack.c.l.b16 %v402
        %v1559 = vunpack.c.l.b16 %v403
        %v1560 = vunpack.c.l.b16 %v404
        %v1561 = vunpack.c.l.b16 %v405
        %v1562 = vunpack.c.l.b16 %v406
        %v1563 = vunpack.c.l.b16 %v407
        %v1564 = vunpack.c.l.b16 %v408
        %v1565 = vunpack.c.l.b16 %v409
        %v1566 = vunpack.c.l.b16 %v410
        %v1567 = vunpack.c.l.b16 %v411
        %v1568 = vunpack.c.l.b16 %v412
        %v1569 = vunpack.c.l.b16 %v413
        %v1570 = vunpack.c.l.b16 %v414
        %v1571 = vunpack.c.l.b16 %v415
        %v1572 = vunpack.c.l.b16 %v416
        %v1573 = vunpack.c.l.b16 %v417
        %v1574 = vunpack.c.l.b16 %v418
        %v1575 = vunpack.c.l.b16 %v419
        %v1576 = vunpack.c.l.b16 %v420
        %v1577 = vunpack.c.l.b16 %v421
        %v1578 = vunpack.c.l.b16 %v422
        %v1579 = vunpack.c.l.b16 %v423
        %v1580 = vunpack.c.l.b16 %v424
        %v1581 = vunpack.c.l.b16 %v425
        %v1582 = vunpack.c.l.b16 %v426
        %v1583 = vunpack.c.l.b16 %v427
        %v1584 = vunpack.c.l.b16 %v428
        %v1585 = vunpack.c.l.b16 %v429
        %v1586 = vunpack.c.l.b16 %v430
        %v1587 = vunpack.c.l.b16 %v431
        %v1588 = vunpack.c.l.b16 %v432
        %v1589 = vunpack.c.l.b16 %v433
        %v1590 = vunpack.c.l.b16 %v434
        %v1591 = vunpack.c.l.b16 %v435
        %v1592 = vunpack.c.l.b16 %v436
        %v1593 = vunpack.c.l.b16 %v437
        %v1594 = vunpack.c.l.b16 %v438
        %v1595 = vunpack.c.l.b16 %v439
        %v1596 = vunpack.c.l.b16 %v440
        %v1597 = vunpack.c.l.b16 %v441
        %v1598 = vunpack.c.l.b16 %v442
        %v1599 = vunpack.c.l.b16 %v443
        %v1600 = vunpack.c.l.b16 %v444
        %v1601 = vunpack.c.l.b16 %v445
        %v1602 = vunpack.c.l.b16 %v446
        %v1603 = vunpack.c.l.b16 %v447
        %v1604 = vunpack.c.l.b16 %v448
        %v1605 = vunpack.c.l.b16 %v449
        %v1606 = vunpack.c.l.b16 %v450
        %v1607 = vunpack.c.l.b16 %v451
        %v1608 = vunpack.c.l.b16 %v452
        %v1609 = vunpack.c.l.b16 %v453
        %v1610 = vunpack.c.l.b16 %v454
        %v1611 = vunpack.c.l.b16 %v455
        %v1612 = vunpack.c.l.b16 %v456
        %v1613 = vunpack.c.l.b16 %v457
        %v1614 = vunpack.c.l.b16 %v458
        %v1615 = vunpack.c.l.b16 %v459
        %v1616 = vunpack.c.l.b16 %v460
        %v1617 = vunpack.c.l.b16 %v461
        %v1618 = vunpack.c.l.b16 %v462
        %v1619 = vunpack.c.l.b16 %v463
        %v1620 = vunpack.c.l.b16 %v464
        %v1621 = vunpack.c.l.b16 %v465
        %v1622 = vunpack.c.l.b16 %v466
        %v1623 = vunpack.c.l.b16 %v467
        %v1624 = vunpack.c.l.b16 %v468
        %v1625 = vunpack.c.l.b16 %v469
        %v1626 = vunpack.c.l.b16 %v470
        %v1627 = vunpack.c.l.b16 %v471
        %v1628 = vunpack.c.l.b16 %v472
        %v1629 = vunpack.c.l.b16 %v473
        %v1630 = vunpack.c.l.b16 %v474
        %v1631 = vunpack.c.l.b16 %v475
        %v1632 = vunpack.c.l.b16 %v476
        %v1633 = vunpack.c.l.b16 %v477
        %v1634 = vunpack.c.l.b16 %v478
        %v1635 = vunpack.c.l.b16 %v479
        %v1636 = vunpack.c.l.b16 %v480
        %v1637 = vunpack.c.l.b16 %v481
        %v1638 = vunpack.c.l.b16 %v482
        %v1639 = vunpack.c.l.b16 %v483
        %v1640 = vunpack.c.l.b16 %v484
        %v1641 = vunpack.c.l.b16 %v485
        %v1642 = vunpack.c.l.b16 %v486
        %v1643 = vunpack.c.l.b16 %v487
        %v1644 = vunpack.c.l.b16 %v488
        %v1645 = vunpack.c.l.b16 %v489
        %v1646 = vunpack.c.l.b16 %v490
        %v1647 = vunpack.c.l.b16 %v491
        %v1648 = vunpack.c.l.b16 %v492
        %v1649 = vunpack.c.l.b16 %v493
        %v1650 = vunpack.c.l.b16 %v494
        %v1651 = vunpack.c.l.b16 %v495
        %v1652 = vunpack.c.l.b16 %v496
        %v1653 = vunpack.c.l.b16 %v497
        %v1654 = vunpack.c.l.b16 %v498
        %v1655 = vunpack.c.l.b16 %v499
        %v1656 = vunpack.c.l.b16 %v500
        %v1657 = vunpack.c.l.b16 %v501
        %v1658 = vunpack.c.l.b16 %v502
        %v1659 = vunpack.c.l.b16 %v503
        %v1660 = vunpack.c.l.b16 %v504
        %v1661 = vunpack.c.l.b16 %v505
        %v1662 = vunpack.c.l.b16 %v506
        %v1663 = vunpack.c.l.b16 %v507
        %v1664 = vunpack.c.l.b16 %v508
        %v1665 = vunpack.c.l.b16 %v509
        %v1666 = vunpack.c.l.b16 %v510
        %v1667 = vunpack.c.l.b16 %v511
        %v1668 = vunpack.c.l.b16 %v512
        %v1669 = vunpack.c.l.b16 %v513
        %v1670 = vunpack.c.l.b16 %v514
        %v1671 = vunpack.c.l.b16 %v515
        %v1672 = vunpack.c.l.b16 %v516
        %v1673 = vunpack.c.l.b16 %v517
        %v1674 = vunpack.c.l.b16 %v518
        %v1675 = vunpack.c.l.b16 %v519
        %v1676 = vunpack.c.l.b16 %v520
        %v1677 = vunpack.c.l.b16 %v521
        %v1678 = vunpack.c.l.b16 %v522
        %v1679 = vunpack.c.l.b16 %v523
        %v1680 = vunpack.c.l.b16 %v524
        %v1681 = vunpack.c.l.b16 %v525
        %v1682 = vunpack.c.l.b16 %v526
        %v1683 = vunpack.c.l.b16 %v527
        %v1684 = vunpack.c.l.b16 %v528
        %v1685 = vunpack.c.l.b16 %v529
        %v1686 = vunpack.c.l.b16 %v530
        %v1687 = vunpack.c.l.b16 %v531
        %v1688 = vunpack.c.l.b16 %v532
        %v1689 = vunpack.c.l.b16 %v533
        %v1690 = vunpack.c.l.b16 %v534
        %v1691 = vunpack.c.l.b16 %v535
        %v1692 = vunpack.c.l.b16 %v536
        %v1693 = vunpack.c.l.b16 %v537
        %v1694 = vunpack.c.l.b16 %v538
        %v1695 = vunpack.c.l.b16 %v539
        %v1696 = vunpack.c.l.b16 %v540
        %v1697 = vunpack.c.l.b16 %v541
        %v1698 = vunpack.c.l.b16 %v542
        %v1699 = vunpack.c.l.b16 %v543
        %v1700 = vunpack.c.l.b16 %v544
        %v1701 = vunpack.c.l.b16 %v545
        %v1702 = vunpack.c.l.b16 %v546
        %v1703 = vunpack.c.l.b16 %v547
        %v1704 = vunpack.c.l.b16 %v548
        %v1705 = vunpack.c.l.b16 %v549
        %v1706 = vunpack.c.l.b16 %v550
        %v1707 = vunpack.c.l.b16 %v551
        %v1708 = vunpack.c.l.b16 %v552
        %v1709 = vunpack.c.l.b16 %v553
        %v1710 = vunpack.c.l.b16 %v554
        %v1711 = vunpack.c.l.b16 %v555
        %v1712 = vunpack.c.l.b16 %v556
        %v1713 = vunpack.c.l.b16 %v557
        %v1714 = vunpack.c.l.b16 %v558
        %v1715 = vunpack.c.l.b16 %v559
        %v1716 = vunpack.c.l.b16 %v560
        %v1717 = vunpack.c.l.b16 %v561
        %v1718 = vunpack.c.l.b16 %v562
        %v1719 = vunpack.c.l.b16 %v563
        %v1720 = vunpack.c.l.b16 %v564
        %v1721 = vunpack.c.l.b16 %v565
        %v1722 = vunpack.c.l.b16 %v566
        %v1723 = vunpack.c.l.b16 %v567
        %v1724 = vunpack.c.l.b16 %v568
        %v1725 = vunpack.c.l.b16 %v569
        %v1726 = vunpack.c.l.b16 %v570
        %v1727 = vunpack.c.l.b16 %v571
        %v1728 = vunpack.c.l.b16 %v572
        %v1729 = vunpack.c.l.b16 %v573
        %v1730 = vunpack.c.l.b16 %v574
        %v1731 = vunpack.c.l.b16 %v575
        %v1732 = vunpack.c.l.b16 %v576
        %v1733 = vunpack.c.l.b16 %v577
        %v1734 = vunpack.c.l.b16 %v578
        %v1735 = vunpack.c.l.b16 %v579
        %v1736 = vunpack.c.l.b16 %v580
        %v1737 = vunpack.c.l.b16 %v581
        %v1738 = vunpack.c.l.b16 %v582
        %v1739 = vunpack.c.l.b16 %v583
        %v1740 = vunpack.c.l.b16 %v584
        %v1741 = vunpack.c.l.b16 %v585
        %v1742 = vunpack.c.l.b16 %v586
        %v1743 = vunpack.c.l.b16 %v587
        %v1744 = vunpack.c.l.b16 %v588
        %v1745 = vunpack.c.l.b16 %v589
        %v1746 = vunpack.c.l.b16 %v590
        %v1747 = vunpack.c.l.b16 %v591
        %v1748 = vunpack.c.l.b16 %v592
        %v1749 = vunpack.c.l.b16 %v593
        %v1750 = vunpack.c.l.b16 %v594
        %v1751 = vpack.c.b16 %v1496, %v1495
        %v1752 = vpack.c.b16 %v1498, %v1497
        %v1753 = vpack.c.b16 %v1500, %v1499
        %v1754 = vpack.c.b16 %v1502, %v1501
        %v1755 = vpack.c.b16 %v1504, %v1503
        %v1756 = vpack.c.b16 %v1506, %v1505
        %v1757 = vpack.c.b16 %v1508, %v1507
        %v1758 = vpack.c.b16 %v1510, %v1509
        %v1759 = vpack.c.b16 %v1512, %v1511
        %v1760 = vpack.c.b16 %v1514, %v1513
        %v1761 = vpack.c.b16 %v1516, %v1515
        %v1762 = vpack.c.b16 %v1518, %v1517
        %v1763 = vpack.c.b16 %v1520, %v1519
        %v1764 = vpack.c.b16 %v1522, %v1521
        %v1765 = vpack.c.b16 %v1524, %v1523
        %v1766 = vpack.c.b16 %v1526, %v1525
        %v1767 = vpack.c.b16 %v1528, %v1527
        %v1768 = vpack.c.b16 %v1530, %v1529
        %v1769 = vpack.c.b16 %v1532, %v1531
        %v1770 = vpack.c.b16 %v1534, %v1533
        %v1771 = vpack.c.b16 %v1536, %v1535
        %v1772 = vpack.c.b16 %v1538, %v1537
        %v1773 = vpack.c.b16 %v1540, %v1539
        %v1774 = vpack.c.b16 %v1542, %v1541
        %v1775 = vpack.c.b16 %v1544, %v1543
        %v1776 = vpack.c.b16 %v1546, %v1545
        %v1777 = vpack.c.b16 %v1548, %v1547
        %v1778 = vpack.c.b16 %v1550, %v1549
        %v1779 = vpack.c.b16 %v1552, %v1551
        %v1780 = vpack.c.b16 %v1554, %v1553
        %v1781 = vpack.c.b16 %v1556, %v1555
        %v1782 = vpack.c.b16 %v1558, %v1557
        %v1783 = vpack.c.b16 %v1560, %v1559
        %v1784 = vpack.c.b16 %v1562, %v1561
        %v1785 = vpack.c.b16 %v1564, %v1563
        %v1786 = vpack.c.b16 %v1566, %v1565
        %v1787 = vpack.c.b16 %v1568, %v1567
        %v1788 = vpack.c.b16 %v1570, %v1569
        %v1789 = vpack.c.b16 %v1572, %v1571
        %v1790 = vpack.c.b16 %v1574, %v1573
        %v1791 = vpack.c.b16 %v1576, %v1575
        %v1792 = vpack.c.b16 %v1578, %v1577
        %v1793 = vpack.c.b16 %v1580, %v1579
        %v1794 = vpack.c.b16 %v1582, %v1581
        %v1795 = vpack.c.b16 %v1584, %v1583
        %v1796 = vpack.c.b16 %v1586, %v1585
        %v1797 = vpack.c.b16 %v1588, %v1587
        %v1798 = vpack.c.b16 %v1590, %v1589
        %v1799 = vpack.c.b16 %v1592, %v1591
        %v1800 = vpack.c.b16 %v1594, %v1593
        %v1801 = vpack.c.b16 %v1596, %v1595
        %v1802 = vpack.c.b16 %v1598, %v1597
        %v1803 = vpack.c.b16 %v1600, %v1599
        %v1804 = vpack.c.b16 %v1602, %v1601
        %v1805 = vpack.c.b16 %v1604, %v1603
        %v1806 = vpack.c.b16 %v1606, %v1605
        %v1807 = vpack.c.b16 %v1608, %v1607
        %v1808 = vpack.c.b16 %v1610, %v1609
        %v1809 = vpack.c.b16 %v1612, %v1611
        %v1810 = vpack.c.b16 %v1614, %v1613
        %v1811 = vpack.c.b16 %v1616, %v1615
        %v1812 = vpack.c.b16 %v1618, %v1617
        %v1813 = vpack.c.b16 %v1620, %v1619
        %v1814 = vpack.c.b16 %v1622, %v1621
        %v1815 = vpack.c.b16 %v1624, %v1623
        %v1816 = vpack.c.b16 %v1626, %v1625
        %v1817 = vpack.c.b16 %v1628, %v1627
        %v1818 = vpack.c.b16 %v1630, %v1629
        %v1819 = vpack.c.b16 %v1632, %v1631
        %v1820 = vpack.c.b16 %v1634, %v1633
        %v1821 = vpack.c.b16 %v1636, %v1635
        %v1822 = vpack.c.b16 %v1638, %v1637
        %v1823 = vpack.c.b16 %v1640, %v1639
        %v1824 = vpack.c.b16 %v1642, %v1641
        %v1825 = vpack.c.b16 %v1644, %v1643
        %v1826 = vpack.c.b16 %v1646, %v1645
        %v1827 = vpack.c.b16 %v1648, %v1647
        %v1828 = vpack.c.b16 %v1650, %v1649
        %v1829 = vpack.c.b16 %v1652, %v1651
        %v1830 = vpack.c.b16 %v1654, %v1653
        %v1831 = vpack.c.b16 %v1656, %v1655
        %v1832 = vpack.c.b16 %v1658, %v1657
        %v1833 = vpack.c.b16 %v1660, %v1659
        %v1834 = vpack.c.b16 %v1662, %v1661
        %v1835 = vpack.c.b16 %v1664, %v1663
        %v1836 = vpack.c.b16 %v1666, %v1665
        %v1837 = vpack.c.b16 %v1668, %v1667
        %v1838 = vpack.c.b16 %v1670, %v1669
        %v1839 = vpack.c.b16 %v1672, %v1671
        %v1840 = vpack.c.b16 %v1674, %v1673
        %v1841 = vpack.c.b16 %v1676, %v1675
        %v1842 = vpack.c.b16 %v1678, %v1677
        %v1843 = vpack.c.b16 %v1680, %v1679
        %v1844 = vpack.c.b16 %v1682, %v1681
        %v1845 = vpack.c.b16 %v1684, %v1683
        %v1846 = vpack.c.b16 %v1686, %v1685
        %v1847 = vpack.c.b16 %v1688, %v1687
        %v1848 = vpack.c.b16 %v1690, %v1689
        %v1849 = vpack.c.b16 %v1692, %v1691
        %v1850 = vpack.c.b16 %v1694, %v1693
        %v1851 = vpack.c.b16 %v1696, %v1695
        %v1852 = vpack.c.b16 %v1698, %v1697
        %v1853 = vpack.c.b16 %v1700, %v1699
        %v1854 = vpack.c.b16 %v1702, %v1701
        %v1855 = vpack.c.b16 %v1704, %v1703
        %v1856 = vpack.c.b16 %v1706, %v1705
        %v1857 = vpack.c.b16 %v1708, %v1707
        %v1858 = vpack.c.b16 %v1710, %v1709
        %v1859 = vpack.c.b16 %v1712, %v1711
        %v1860 = vpack.c.b16 %v1714, %v1713
        %v1861 = vpack.c.b16 %v1716, %v1715
        %v1862 = vpack.c.b16 %v1718, %v1717
        %v1863 = vpack.c.b16 %v1720, %v1719
        %v1864 = vpack.c.b16 %v1722, %v1721
        %v1865 = vpack.c.b16 %v1724, %v1723
        %v1866 = vpack.c.b16 %v1726, %v1725
        %v1867 = vpack.c.b16 %v1728, %v1727
        %v1868 = vpack.c.b16 %v1730, %v1729
        %v1869 = vpack.c.b16 %v1732, %v1731
        %v1870 = vpack.c.b16 %v1734, %v1733
        %v1871 = vpack.c.b16 %v1736, %v1735
        %v1872 = vpack.c.b16 %v1738, %v1737
        %v1873 = vpack.c.b16 %v1740, %v1739
        %v1874 = vpack.c.b16 %v1742, %v1741
        %v1875 = vpack.c.b16 %v1744, %v1743
        %v1876 = vpack.c.b16 %v1746, %v1745
        %v1877 = vpack.c.b16 %v1748, %v1747
        %v1878 = vpack.c.b16 %v1750, %v1749
        %2007 = vmatpush.bf16.msra.mxu0 %v1758
        %2008 = vmatpush.bf16.msra.mxu0 %v1757
        %2009 = vmatpush.bf16.msra.mxu0 %v1756
        %2010 = vmatpush.bf16.msra.mxu0 %v1755
        %2011 = vmatpush.bf16.msra.mxu0 %v1754
        %2012 = vmatpush.bf16.msra.mxu0 %v1753
        %2013 = vmatpush.bf16.msra.mxu0 %v1752
        %2014 = vmatpush.bf16.msra.mxu0 %v1751
        %2015 = vmatmul.bf16.gmra.mxu0 %v983
        %v2016 = vpop.f32.mrf.mxu0
        %v2017 = vadd.f32 %v597, %v2016
        %v2018 = vpop.f32.mrf.mxu0
        %v2019 = vadd.f32 %v597, %v2018
        %2020 = vmatmul.bf16.gmra.mxu0 %v999
        %v2021 = vpop.f32.mrf.mxu0
        %v2022 = vadd.f32 %v597, %v2021
        %v2023 = vpop.f32.mrf.mxu0
        %v2024 = vadd.f32 %v597, %v2023
        %2025 = vmatmul.bf16.gmra.mxu0 %v1015
        %v2026 = vpop.f32.mrf.mxu0
        %v2027 = vadd.f32 %v597, %v2026
        %v2028 = vpop.f32.mrf.mxu0
        %v2029 = vadd.f32 %v597, %v2028
        %2030 = vmatmul.bf16.gmra.mxu0 %v1031
        %v2031 = vpop.f32.mrf.mxu0
        %v2032 = vadd.f32 %v597, %v2031
        %v2033 = vpop.f32.mrf.mxu0
        %v2034 = vadd.f32 %v597, %v2033
        %2035 = vmatmul.bf16.gmra.mxu0 %v1047
        %v2036 = vpop.f32.mrf.mxu0
        %v2037 = vadd.f32 %v597, %v2036
        %v2038 = vpop.f32.mrf.mxu0
        %v2039 = vadd.f32 %v597, %v2038
        %2040 = vmatmul.bf16.gmra.mxu0 %v1063
        %v2041 = vpop.f32.mrf.mxu0
        %v2042 = vadd.f32 %v597, %v2041
        %v2043 = vpop.f32.mrf.mxu0
        %v2044 = vadd.f32 %v597, %v2043
        %2045 = vmatmul.bf16.gmra.mxu0 %v1079
        %v2046 = vpop.f32.mrf.mxu0
        %v2047 = vadd.f32 %v597, %v2046
        %v2048 = vpop.f32.mrf.mxu0
        %v2049 = vadd.f32 %v597, %v2048
        %2050 = vmatmul.bf16.gmra.mxu0 %v1095
        %v2051 = vpop.f32.mrf.mxu0
        %v2052 = vadd.f32 %v597, %v2051
        %v2053 = vpop.f32.mrf.mxu0
        %v2054 = vadd.f32 %v597, %v2053
        %2055 = vdwg.mxu0
        %2056 = vmatpush.bf16.msra.mxu0 %v1766
        %2057 = vmatpush.bf16.msra.mxu0 %v1765
        %2058 = vmatpush.bf16.msra.mxu0 %v1764
        %2059 = vmatpush.bf16.msra.mxu0 %v1763
        %2060 = vmatpush.bf16.msra.mxu0 %v1762
        %2061 = vmatpush.bf16.msra.mxu0 %v1761
        %2062 = vmatpush.bf16.msra.mxu0 %v1760
        %2063 = vmatpush.bf16.msra.mxu0 %v1759
        %2064 = vmatmul.bf16.gmra.mxu0 %v984
        %v2065 = vpop.f32.mrf.mxu0
        %v2066 = vadd.f32 %v2017, %v2065
        %v2067 = vpop.f32.mrf.mxu0
        %v2068 = vadd.f32 %v2019, %v2067
        %2069 = vmatmul.bf16.gmra.mxu0 %v1000
        %v2070 = vpop.f32.mrf.mxu0
        %v2071 = vadd.f32 %v2022, %v2070
        %v2072 = vpop.f32.mrf.mxu0
        %v2073 = vadd.f32 %v2024, %v2072
        %2074 = vmatmul.bf16.gmra.mxu0 %v1016
        %v2075 = vpop.f32.mrf.mxu0
        %v2076 = vadd.f32 %v2027, %v2075
        %v2077 = vpop.f32.mrf.mxu0
        %v2078 = vadd.f32 %v2029, %v2077
        %2079 = vmatmul.bf16.gmra.mxu0 %v1032
        %v2080 = vpop.f32.mrf.mxu0
        %v2081 = vadd.f32 %v2032, %v2080
        %v2082 = vpop.f32.mrf.mxu0
        %v2083 = vadd.f32 %v2034, %v2082
        %2084 = vmatmul.bf16.gmra.mxu0 %v1048
        %v2085 = vpop.f32.mrf.mxu0
        %v2086 = vadd.f32 %v2037, %v2085
        %v2087 = vpop.f32.mrf.mxu0
        %v2088 = vadd.f32 %v2039, %v2087
        %2089 = vmatmul.bf16.gmra.mxu0 %v1064
        %v2090 = vpop.f32.mrf.mxu0
        %v2091 = vadd.f32 %v2042, %v2090
        %v2092 = vpop.f32.mrf.mxu0
        %v2093 = vadd.f32 %v2044, %v2092
        %2094 = vmatmul.bf16.gmra.mxu0 %v1080
        %v2095 = vpop.f32.mrf.mxu0
        %v2096 = vadd.f32 %v2047, %v2095
        %v2097 = vpop.f32.mrf.mxu0
        %v2098 = vadd.f32 %v2049, %v2097
        %2099 = vmatmul.bf16.gmra.mxu0 %v1096
        %v2100 = vpop.f32.mrf.mxu0
        %v2101 = vadd.f32 %v2052, %v2100
        %v2102 = vpop.f32.mrf.mxu0
        %v2103 = vadd.f32 %v2054, %v2102
        %2104 = vdwg.mxu0
        %2105 = vmatpush.bf16.msra.mxu0 %v1774
        %2106 = vmatpush.bf16.msra.mxu0 %v1773
        %2107 = vmatpush.bf16.msra.mxu0 %v1772
        %2108 = vmatpush.bf16.msra.mxu0 %v1771
        %2109 = vmatpush.bf16.msra.mxu0 %v1770
        %2110 = vmatpush.bf16.msra.mxu0 %v1769
        %2111 = vmatpush.bf16.msra.mxu0 %v1768
        %2112 = vmatpush.bf16.msra.mxu0 %v1767
        %2113 = vmatmul.bf16.gmra.mxu0 %v985
        %v2114 = vpop.f32.mrf.mxu0
        %v2115 = vadd.f32 %v2066, %v2114
        %v2116 = vpop.f32.mrf.mxu0
        %v2117 = vadd.f32 %v2068, %v2116
        %2118 = vmatmul.bf16.gmra.mxu0 %v1001
        %v2119 = vpop.f32.mrf.mxu0
        %v2120 = vadd.f32 %v2071, %v2119
        %v2121 = vpop.f32.mrf.mxu0
        %v2122 = vadd.f32 %v2073, %v2121
        %2123 = vmatmul.bf16.gmra.mxu0 %v1017
        %v2124 = vpop.f32.mrf.mxu0
        %v2125 = vadd.f32 %v2076, %v2124
        %v2126 = vpop.f32.mrf.mxu0
        %v2127 = vadd.f32 %v2078, %v2126
        %2128 = vmatmul.bf16.gmra.mxu0 %v1033
        %v2129 = vpop.f32.mrf.mxu0
        %v2130 = vadd.f32 %v2081, %v2129
        %v2131 = vpop.f32.mrf.mxu0
        %v2132 = vadd.f32 %v2083, %v2131
        %2133 = vmatmul.bf16.gmra.mxu0 %v1049
        %v2134 = vpop.f32.mrf.mxu0
        %v2135 = vadd.f32 %v2086, %v2134
        %v2136 = vpop.f32.mrf.mxu0
        %v2137 = vadd.f32 %v2088, %v2136
        %2138 = vmatmul.bf16.gmra.mxu0 %v1065
        %v2139 = vpop.f32.mrf.mxu0
        %v2140 = vadd.f32 %v2091, %v2139
        %v2141 = vpop.f32.mrf.mxu0
        %v2142 = vadd.f32 %v2093, %v2141
        %2143 = vmatmul.bf16.gmra.mxu0 %v1081
        %v2144 = vpop.f32.mrf.mxu0
        %v2145 = vadd.f32 %v2096, %v2144
        %v2146 = vpop.f32.mrf.mxu0
        %v2147 = vadd.f32 %v2098, %v2146
        %2148 = vmatmul.bf16.gmra.mxu0 %v1097
        %v2149 = vpop.f32.mrf.mxu0
        %v2150 = vadd.f32 %v2101, %v2149
        %v2151 = vpop.f32.mrf.mxu0
        %v2152 = vadd.f32 %v2103, %v2151
        %2153 = vdwg.mxu0
        %2154 = vmatpush.bf16.msra.mxu0 %v1782
        %2155 = vmatpush.bf16.msra.mxu0 %v1781
        %2156 = vmatpush.bf16.msra.mxu0 %v1780
        %2157 = vmatpush.bf16.msra.mxu0 %v1779
        %2158 = vmatpush.bf16.msra.mxu0 %v1778
        %2159 = vmatpush.bf16.msra.mxu0 %v1777
        %2160 = vmatpush.bf16.msra.mxu0 %v1776
        %2161 = vmatpush.bf16.msra.mxu0 %v1775
        %2162 = vmatmul.bf16.gmra.mxu0 %v986
        %v2163 = vpop.f32.mrf.mxu0
        %v2164 = vadd.f32 %v2115, %v2163
        %v2165 = vpop.f32.mrf.mxu0
        %v2166 = vadd.f32 %v2117, %v2165
        %2167 = vmatmul.bf16.gmra.mxu0 %v1002
        %v2168 = vpop.f32.mrf.mxu0
        %v2169 = vadd.f32 %v2120, %v2168
        %v2170 = vpop.f32.mrf.mxu0
        %v2171 = vadd.f32 %v2122, %v2170
        %2172 = vmatmul.bf16.gmra.mxu0 %v1018
        %v2173 = vpop.f32.mrf.mxu0
        %v2174 = vadd.f32 %v2125, %v2173
        %v2175 = vpop.f32.mrf.mxu0
        %v2176 = vadd.f32 %v2127, %v2175
        %2177 = vmatmul.bf16.gmra.mxu0 %v1034
        %v2178 = vpop.f32.mrf.mxu0
        %v2179 = vadd.f32 %v2130, %v2178
        %v2180 = vpop.f32.mrf.mxu0
        %v2181 = vadd.f32 %v2132, %v2180
        %2182 = vmatmul.bf16.gmra.mxu0 %v1050
        %v2183 = vpop.f32.mrf.mxu0
        %v2184 = vadd.f32 %v2135, %v2183
        %v2185 = vpop.f32.mrf.mxu0
        %v2186 = vadd.f32 %v2137, %v2185
        %2187 = vmatmul.bf16.gmra.mxu0 %v1066
        %v2188 = vpop.f32.mrf.mxu0
        %v2189 = vadd.f32 %v2140, %v2188
        %v2190 = vpop.f32.mrf.mxu0
        %v2191 = vadd.f32 %v2142, %v2190
        %2192 = vmatmul.bf16.gmra.mxu0 %v1082
        %v2193 = vpop.f32.mrf.mxu0
        %v2194 = vadd.f32 %v2145, %v2193
        %v2195 = vpop.f32.mrf.mxu0
        %v2196 = vadd.f32 %v2147, %v2195
        %2197 = vmatmul.bf16.gmra.mxu0 %v1098
        %v2198 = vpop.f32.mrf.mxu0
        %v2199 = vadd.f32 %v2150, %v2198
        %v2200 = vpop.f32.mrf.mxu0
        %v2201 = vadd.f32 %v2152, %v2200
        %2202 = vdwg.mxu0
        %2203 = vmatpush.bf16.msra.mxu0 %v1790
        %2204 = vmatpush.bf16.msra.mxu0 %v1789
        %2205 = vmatpush.bf16.msra.mxu0 %v1788
        %2206 = vmatpush.bf16.msra.mxu0 %v1787
        %2207 = vmatpush.bf16.msra.mxu0 %v1786
        %2208 = vmatpush.bf16.msra.mxu0 %v1785
        %2209 = vmatpush.bf16.msra.mxu0 %v1784
        %2210 = vmatpush.bf16.msra.mxu0 %v1783
        %2211 = vmatmul.bf16.gmra.mxu0 %v987
        %v2212 = vpop.f32.mrf.mxu0
        %v2213 = vadd.f32 %v2164, %v2212
        %v2214 = vpop.f32.mrf.mxu0
        %v2215 = vadd.f32 %v2166, %v2214
        %2216 = vmatmul.bf16.gmra.mxu0 %v1003
        %v2217 = vpop.f32.mrf.mxu0
        %v2218 = vadd.f32 %v2169, %v2217
        %v2219 = vpop.f32.mrf.mxu0
        %v2220 = vadd.f32 %v2171, %v2219
        %2221 = vmatmul.bf16.gmra.mxu0 %v1019
        %v2222 = vpop.f32.mrf.mxu0
        %v2223 = vadd.f32 %v2174, %v2222
        %v2224 = vpop.f32.mrf.mxu0
        %v2225 = vadd.f32 %v2176, %v2224
        %2226 = vmatmul.bf16.gmra.mxu0 %v1035
        %v2227 = vpop.f32.mrf.mxu0
        %v2228 = vadd.f32 %v2179, %v2227
        %v2229 = vpop.f32.mrf.mxu0
        %v2230 = vadd.f32 %v2181, %v2229
        %2231 = vmatmul.bf16.gmra.mxu0 %v1051
        %v2232 = vpop.f32.mrf.mxu0
        %v2233 = vadd.f32 %v2184, %v2232
        %v2234 = vpop.f32.mrf.mxu0
        %v2235 = vadd.f32 %v2186, %v2234
        %2236 = vmatmul.bf16.gmra.mxu0 %v1067
        %v2237 = vpop.f32.mrf.mxu0
        %v2238 = vadd.f32 %v2189, %v2237
        %v2239 = vpop.f32.mrf.mxu0
        %v2240 = vadd.f32 %v2191, %v2239
        %2241 = vmatmul.bf16.gmra.mxu0 %v1083
        %v2242 = vpop.f32.mrf.mxu0
        %v2243 = vadd.f32 %v2194, %v2242
        %v2244 = vpop.f32.mrf.mxu0
        %v2245 = vadd.f32 %v2196, %v2244
        %2246 = vmatmul.bf16.gmra.mxu0 %v1099
        %v2247 = vpop.f32.mrf.mxu0
        %v2248 = vadd.f32 %v2199, %v2247
        %v2249 = vpop.f32.mrf.mxu0
        %v2250 = vadd.f32 %v2201, %v2249
        %2251 = vdwg.mxu0
        %2252 = vmatpush.bf16.msra.mxu0 %v1798
        %2253 = vmatpush.bf16.msra.mxu0 %v1797
        %2254 = vmatpush.bf16.msra.mxu0 %v1796
        %2255 = vmatpush.bf16.msra.mxu0 %v1795
        %2256 = vmatpush.bf16.msra.mxu0 %v1794
        %2257 = vmatpush.bf16.msra.mxu0 %v1793
        %2258 = vmatpush.bf16.msra.mxu0 %v1792
        %2259 = vmatpush.bf16.msra.mxu0 %v1791
        %2260 = vmatmul.bf16.gmra.mxu0 %v988
        %v2261 = vpop.f32.mrf.mxu0
        %v2262 = vadd.f32 %v2213, %v2261
        %v2263 = vpop.f32.mrf.mxu0
        %v2264 = vadd.f32 %v2215, %v2263
        %2265 = vmatmul.bf16.gmra.mxu0 %v1004
        %v2266 = vpop.f32.mrf.mxu0
        %v2267 = vadd.f32 %v2218, %v2266
        %v2268 = vpop.f32.mrf.mxu0
        %v2269 = vadd.f32 %v2220, %v2268
        %2270 = vmatmul.bf16.gmra.mxu0 %v1020
        %v2271 = vpop.f32.mrf.mxu0
        %v2272 = vadd.f32 %v2223, %v2271
        %v2273 = vpop.f32.mrf.mxu0
        %v2274 = vadd.f32 %v2225, %v2273
        %2275 = vmatmul.bf16.gmra.mxu0 %v1036
        %v2276 = vpop.f32.mrf.mxu0
        %v2277 = vadd.f32 %v2228, %v2276
        %v2278 = vpop.f32.mrf.mxu0
        %v2279 = vadd.f32 %v2230, %v2278
        %2280 = vmatmul.bf16.gmra.mxu0 %v1052
        %v2281 = vpop.f32.mrf.mxu0
        %v2282 = vadd.f32 %v2233, %v2281
        %v2283 = vpop.f32.mrf.mxu0
        %v2284 = vadd.f32 %v2235, %v2283
        %2285 = vmatmul.bf16.gmra.mxu0 %v1068
        %v2286 = vpop.f32.mrf.mxu0
        %v2287 = vadd.f32 %v2238, %v2286
        %v2288 = vpop.f32.mrf.mxu0
        %v2289 = vadd.f32 %v2240, %v2288
        %2290 = vmatmul.bf16.gmra.mxu0 %v1084
        %v2291 = vpop.f32.mrf.mxu0
        %v2292 = vadd.f32 %v2243, %v2291
        %v2293 = vpop.f32.mrf.mxu0
        %v2294 = vadd.f32 %v2245, %v2293
        %2295 = vmatmul.bf16.gmra.mxu0 %v1100
        %v2296 = vpop.f32.mrf.mxu0
        %v2297 = vadd.f32 %v2248, %v2296
        %v2298 = vpop.f32.mrf.mxu0
        %v2299 = vadd.f32 %v2250, %v2298
        %2300 = vdwg.mxu0
        %2301 = vmatpush.bf16.msra.mxu0 %v1806
        %2302 = vmatpush.bf16.msra.mxu0 %v1805
        %2303 = vmatpush.bf16.msra.mxu0 %v1804
        %2304 = vmatpush.bf16.msra.mxu0 %v1803
        %2305 = vmatpush.bf16.msra.mxu0 %v1802
        %2306 = vmatpush.bf16.msra.mxu0 %v1801
        %2307 = vmatpush.bf16.msra.mxu0 %v1800
        %2308 = vmatpush.bf16.msra.mxu0 %v1799
        %2309 = vmatmul.bf16.gmra.mxu0 %v989
        %v2310 = vpop.f32.mrf.mxu0
        %v2311 = vadd.f32 %v2262, %v2310
        %v2312 = vpop.f32.mrf.mxu0
        %v2313 = vadd.f32 %v2264, %v2312
        %2314 = vmatmul.bf16.gmra.mxu0 %v1005
        %v2315 = vpop.f32.mrf.mxu0
        %v2316 = vadd.f32 %v2267, %v2315
        %v2317 = vpop.f32.mrf.mxu0
        %v2318 = vadd.f32 %v2269, %v2317
        %2319 = vmatmul.bf16.gmra.mxu0 %v1021
        %v2320 = vpop.f32.mrf.mxu0
        %v2321 = vadd.f32 %v2272, %v2320
        %v2322 = vpop.f32.mrf.mxu0
        %v2323 = vadd.f32 %v2274, %v2322
        %2324 = vmatmul.bf16.gmra.mxu0 %v1037
        %v2325 = vpop.f32.mrf.mxu0
        %v2326 = vadd.f32 %v2277, %v2325
        %v2327 = vpop.f32.mrf.mxu0
        %v2328 = vadd.f32 %v2279, %v2327
        %2329 = vmatmul.bf16.gmra.mxu0 %v1053
        %v2330 = vpop.f32.mrf.mxu0
        %v2331 = vadd.f32 %v2282, %v2330
        %v2332 = vpop.f32.mrf.mxu0
        %v2333 = vadd.f32 %v2284, %v2332
        %2334 = vmatmul.bf16.gmra.mxu0 %v1069
        %v2335 = vpop.f32.mrf.mxu0
        %v2336 = vadd.f32 %v2287, %v2335
        %v2337 = vpop.f32.mrf.mxu0
        %v2338 = vadd.f32 %v2289, %v2337
        %2339 = vmatmul.bf16.gmra.mxu0 %v1085
        %v2340 = vpop.f32.mrf.mxu0
        %v2341 = vadd.f32 %v2292, %v2340
        %v2342 = vpop.f32.mrf.mxu0
        %v2343 = vadd.f32 %v2294, %v2342
        %2344 = vmatmul.bf16.gmra.mxu0 %v1101
        %v2345 = vpop.f32.mrf.mxu0
        %v2346 = vadd.f32 %v2297, %v2345
        %v2347 = vpop.f32.mrf.mxu0
        %v2348 = vadd.f32 %v2299, %v2347
        %2349 = vdwg.mxu0
        %2350 = vmatpush.bf16.msra.mxu0 %v1814
        %2351 = vmatpush.bf16.msra.mxu0 %v1813
        %2352 = vmatpush.bf16.msra.mxu0 %v1812
        %2353 = vmatpush.bf16.msra.mxu0 %v1811
        %2354 = vmatpush.bf16.msra.mxu0 %v1810
        %2355 = vmatpush.bf16.msra.mxu0 %v1809
        %2356 = vmatpush.bf16.msra.mxu0 %v1808
        %2357 = vmatpush.bf16.msra.mxu0 %v1807
        %2358 = vmatmul.bf16.gmra.mxu0 %v990
        %v2359 = vpop.f32.mrf.mxu0
        %v2360 = vadd.f32 %v2311, %v2359
        %v2361 = vpop.f32.mrf.mxu0
        %v2362 = vadd.f32 %v2313, %v2361
        %2363 = vmatmul.bf16.gmra.mxu0 %v1006
        %v2364 = vpop.f32.mrf.mxu0
        %v2365 = vadd.f32 %v2316, %v2364
        %v2366 = vpop.f32.mrf.mxu0
        %v2367 = vadd.f32 %v2318, %v2366
        %2368 = vmatmul.bf16.gmra.mxu0 %v1022
        %v2369 = vpop.f32.mrf.mxu0
        %v2370 = vadd.f32 %v2321, %v2369
        %v2371 = vpop.f32.mrf.mxu0
        %v2372 = vadd.f32 %v2323, %v2371
        %2373 = vmatmul.bf16.gmra.mxu0 %v1038
        %v2374 = vpop.f32.mrf.mxu0
        %v2375 = vadd.f32 %v2326, %v2374
        %v2376 = vpop.f32.mrf.mxu0
        %v2377 = vadd.f32 %v2328, %v2376
        %2378 = vmatmul.bf16.gmra.mxu0 %v1054
        %v2379 = vpop.f32.mrf.mxu0
        %v2380 = vadd.f32 %v2331, %v2379
        %v2381 = vpop.f32.mrf.mxu0
        %v2382 = vadd.f32 %v2333, %v2381
        %2383 = vmatmul.bf16.gmra.mxu0 %v1070
        %v2384 = vpop.f32.mrf.mxu0
        %v2385 = vadd.f32 %v2336, %v2384
        %v2386 = vpop.f32.mrf.mxu0
        %v2387 = vadd.f32 %v2338, %v2386
        %2388 = vmatmul.bf16.gmra.mxu0 %v1086
        %v2389 = vpop.f32.mrf.mxu0
        %v2390 = vadd.f32 %v2341, %v2389
        %v2391 = vpop.f32.mrf.mxu0
        %v2392 = vadd.f32 %v2343, %v2391
        %2393 = vmatmul.bf16.gmra.mxu0 %v1102
        %v2394 = vpop.f32.mrf.mxu0
        %v2395 = vadd.f32 %v2346, %v2394
        %v2396 = vpop.f32.mrf.mxu0
        %v2397 = vadd.f32 %v2348, %v2396
        %2398 = vdwg.mxu0
        %2399 = vmatpush.bf16.msra.mxu0 %v1822
        %2400 = vmatpush.bf16.msra.mxu0 %v1821
        %2401 = vmatpush.bf16.msra.mxu0 %v1820
        %2402 = vmatpush.bf16.msra.mxu0 %v1819
        %2403 = vmatpush.bf16.msra.mxu0 %v1818
        %2404 = vmatpush.bf16.msra.mxu0 %v1817
        %2405 = vmatpush.bf16.msra.mxu0 %v1816
        %2406 = vmatpush.bf16.msra.mxu0 %v1815
        %2407 = vmatmul.bf16.gmra.mxu0 %v991
        %v2408 = vpop.f32.mrf.mxu0
        %v2409 = vadd.f32 %v2360, %v2408
        %v2410 = vpop.f32.mrf.mxu0
        %v2411 = vadd.f32 %v2362, %v2410
        %2412 = vmatmul.bf16.gmra.mxu0 %v1007
        %v2413 = vpop.f32.mrf.mxu0
        %v2414 = vadd.f32 %v2365, %v2413
        %v2415 = vpop.f32.mrf.mxu0
        %v2416 = vadd.f32 %v2367, %v2415
        %2417 = vmatmul.bf16.gmra.mxu0 %v1023
        %v2418 = vpop.f32.mrf.mxu0
        %v2419 = vadd.f32 %v2370, %v2418
        %v2420 = vpop.f32.mrf.mxu0
        %v2421 = vadd.f32 %v2372, %v2420
        %2422 = vmatmul.bf16.gmra.mxu0 %v1039
        %v2423 = vpop.f32.mrf.mxu0
        %v2424 = vadd.f32 %v2375, %v2423
        %v2425 = vpop.f32.mrf.mxu0
        %v2426 = vadd.f32 %v2377, %v2425
        %2427 = vmatmul.bf16.gmra.mxu0 %v1055
        %v2428 = vpop.f32.mrf.mxu0
        %v2429 = vadd.f32 %v2380, %v2428
        %v2430 = vpop.f32.mrf.mxu0
        %v2431 = vadd.f32 %v2382, %v2430
        %2432 = vmatmul.bf16.gmra.mxu0 %v1071
        %v2433 = vpop.f32.mrf.mxu0
        %v2434 = vadd.f32 %v2385, %v2433
        %v2435 = vpop.f32.mrf.mxu0
        %v2436 = vadd.f32 %v2387, %v2435
        %2437 = vmatmul.bf16.gmra.mxu0 %v1087
        %v2438 = vpop.f32.mrf.mxu0
        %v2439 = vadd.f32 %v2390, %v2438
        %v2440 = vpop.f32.mrf.mxu0
        %v2441 = vadd.f32 %v2392, %v2440
        %2442 = vmatmul.bf16.gmra.mxu0 %v1103
        %v2443 = vpop.f32.mrf.mxu0
        %v2444 = vadd.f32 %v2395, %v2443
        %v2445 = vpop.f32.mrf.mxu0
        %v2446 = vadd.f32 %v2397, %v2445
        %2447 = vdwg.mxu0
        %2448 = vmatpush.bf16.msra.mxu0 %v1830
        %2449 = vmatpush.bf16.msra.mxu0 %v1829
        %2450 = vmatpush.bf16.msra.mxu0 %v1828
        %2451 = vmatpush.bf16.msra.mxu0 %v1827
        %2452 = vmatpush.bf16.msra.mxu0 %v1826
        %2453 = vmatpush.bf16.msra.mxu0 %v1825
        %2454 = vmatpush.bf16.msra.mxu0 %v1824
        %2455 = vmatpush.bf16.msra.mxu0 %v1823
        %2456 = vmatmul.bf16.gmra.mxu0 %v992
        %v2457 = vpop.f32.mrf.mxu0
        %v2458 = vadd.f32 %v2409, %v2457
        %v2459 = vpop.f32.mrf.mxu0
        %v2460 = vadd.f32 %v2411, %v2459
        %2461 = vmatmul.bf16.gmra.mxu0 %v1008
        %v2462 = vpop.f32.mrf.mxu0
        %v2463 = vadd.f32 %v2414, %v2462
        %v2464 = vpop.f32.mrf.mxu0
        %v2465 = vadd.f32 %v2416, %v2464
        %2466 = vmatmul.bf16.gmra.mxu0 %v1024
        %v2467 = vpop.f32.mrf.mxu0
        %v2468 = vadd.f32 %v2419, %v2467
        %v2469 = vpop.f32.mrf.mxu0
        %v2470 = vadd.f32 %v2421, %v2469
        %2471 = vmatmul.bf16.gmra.mxu0 %v1040
        %v2472 = vpop.f32.mrf.mxu0
        %v2473 = vadd.f32 %v2424, %v2472
        %v2474 = vpop.f32.mrf.mxu0
        %v2475 = vadd.f32 %v2426, %v2474
        %2476 = vmatmul.bf16.gmra.mxu0 %v1056
        %v2477 = vpop.f32.mrf.mxu0
        %v2478 = vadd.f32 %v2429, %v2477
        %v2479 = vpop.f32.mrf.mxu0
        %v2480 = vadd.f32 %v2431, %v2479
        %2481 = vmatmul.bf16.gmra.mxu0 %v1072
        %v2482 = vpop.f32.mrf.mxu0
        %v2483 = vadd.f32 %v2434, %v2482
        %v2484 = vpop.f32.mrf.mxu0
        %v2485 = vadd.f32 %v2436, %v2484
        %2486 = vmatmul.bf16.gmra.mxu0 %v1088
        %v2487 = vpop.f32.mrf.mxu0
        %v2488 = vadd.f32 %v2439, %v2487
        %v2489 = vpop.f32.mrf.mxu0
        %v2490 = vadd.f32 %v2441, %v2489
        %2491 = vmatmul.bf16.gmra.mxu0 %v1104
        %v2492 = vpop.f32.mrf.mxu0
        %v2493 = vadd.f32 %v2444, %v2492
        %v2494 = vpop.f32.mrf.mxu0
        %v2495 = vadd.f32 %v2446, %v2494
        %2496 = vdwg.mxu0
        %2497 = vmatpush.bf16.msra.mxu0 %v1838
        %2498 = vmatpush.bf16.msra.mxu0 %v1837
        %2499 = vmatpush.bf16.msra.mxu0 %v1836
        %2500 = vmatpush.bf16.msra.mxu0 %v1835
        %2501 = vmatpush.bf16.msra.mxu0 %v1834
        %2502 = vmatpush.bf16.msra.mxu0 %v1833
        %2503 = vmatpush.bf16.msra.mxu0 %v1832
        %2504 = vmatpush.bf16.msra.mxu0 %v1831
        %2505 = vmatmul.bf16.gmra.mxu0 %v993
        %v2506 = vpop.f32.mrf.mxu0
        %v2507 = vadd.f32 %v2458, %v2506
        %v2508 = vpop.f32.mrf.mxu0
        %v2509 = vadd.f32 %v2460, %v2508
        %2510 = vmatmul.bf16.gmra.mxu0 %v1009
        %v2511 = vpop.f32.mrf.mxu0
        %v2512 = vadd.f32 %v2463, %v2511
        %v2513 = vpop.f32.mrf.mxu0
        %v2514 = vadd.f32 %v2465, %v2513
        %2515 = vmatmul.bf16.gmra.mxu0 %v1025
        %v2516 = vpop.f32.mrf.mxu0
        %v2517 = vadd.f32 %v2468, %v2516
        %v2518 = vpop.f32.mrf.mxu0
        %v2519 = vadd.f32 %v2470, %v2518
        %2520 = vmatmul.bf16.gmra.mxu0 %v1041
        %v2521 = vpop.f32.mrf.mxu0
        %v2522 = vadd.f32 %v2473, %v2521
        %v2523 = vpop.f32.mrf.mxu0
        %v2524 = vadd.f32 %v2475, %v2523
        %2525 = vmatmul.bf16.gmra.mxu0 %v1057
        %v2526 = vpop.f32.mrf.mxu0
        %v2527 = vadd.f32 %v2478, %v2526
        %v2528 = vpop.f32.mrf.mxu0
        %v2529 = vadd.f32 %v2480, %v2528
        %2530 = vmatmul.bf16.gmra.mxu0 %v1073
        %v2531 = vpop.f32.mrf.mxu0
        %v2532 = vadd.f32 %v2483, %v2531
        %v2533 = vpop.f32.mrf.mxu0
        %v2534 = vadd.f32 %v2485, %v2533
        %2535 = vmatmul.bf16.gmra.mxu0 %v1089
        %v2536 = vpop.f32.mrf.mxu0
        %v2537 = vadd.f32 %v2488, %v2536
        %v2538 = vpop.f32.mrf.mxu0
        %v2539 = vadd.f32 %v2490, %v2538
        %2540 = vmatmul.bf16.gmra.mxu0 %v1105
        %v2541 = vpop.f32.mrf.mxu0
        %v2542 = vadd.f32 %v2493, %v2541
        %v2543 = vpop.f32.mrf.mxu0
        %v2544 = vadd.f32 %v2495, %v2543
        %2545 = vdwg.mxu0
        %2546 = vmatpush.bf16.msra.mxu0 %v1846
        %2547 = vmatpush.bf16.msra.mxu0 %v1845
        %2548 = vmatpush.bf16.msra.mxu0 %v1844
        %2549 = vmatpush.bf16.msra.mxu0 %v1843
        %2550 = vmatpush.bf16.msra.mxu0 %v1842
        %2551 = vmatpush.bf16.msra.mxu0 %v1841
        %2552 = vmatpush.bf16.msra.mxu0 %v1840
        %2553 = vmatpush.bf16.msra.mxu0 %v1839
        %2554 = vmatmul.bf16.gmra.mxu0 %v994
        %v2555 = vpop.f32.mrf.mxu0
        %v2556 = vadd.f32 %v2507, %v2555
        %v2557 = vpop.f32.mrf.mxu0
        %v2558 = vadd.f32 %v2509, %v2557
        %2559 = vmatmul.bf16.gmra.mxu0 %v1010
        %v2560 = vpop.f32.mrf.mxu0
        %v2561 = vadd.f32 %v2512, %v2560
        %v2562 = vpop.f32.mrf.mxu0
        %v2563 = vadd.f32 %v2514, %v2562
        %2564 = vmatmul.bf16.gmra.mxu0 %v1026
        %v2565 = vpop.f32.mrf.mxu0
        %v2566 = vadd.f32 %v2517, %v2565
        %v2567 = vpop.f32.mrf.mxu0
        %v2568 = vadd.f32 %v2519, %v2567
        %2569 = vmatmul.bf16.gmra.mxu0 %v1042
        %v2570 = vpop.f32.mrf.mxu0
        %v2571 = vadd.f32 %v2522, %v2570
        %v2572 = vpop.f32.mrf.mxu0
        %v2573 = vadd.f32 %v2524, %v2572
        %2574 = vmatmul.bf16.gmra.mxu0 %v1058
        %v2575 = vpop.f32.mrf.mxu0
        %v2576 = vadd.f32 %v2527, %v2575
        %v2577 = vpop.f32.mrf.mxu0
        %v2578 = vadd.f32 %v2529, %v2577
        %2579 = vmatmul.bf16.gmra.mxu0 %v1074
        %v2580 = vpop.f32.mrf.mxu0
        %v2581 = vadd.f32 %v2532, %v2580
        %v2582 = vpop.f32.mrf.mxu0
        %v2583 = vadd.f32 %v2534, %v2582
        %2584 = vmatmul.bf16.gmra.mxu0 %v1090
        %v2585 = vpop.f32.mrf.mxu0
        %v2586 = vadd.f32 %v2537, %v2585
        %v2587 = vpop.f32.mrf.mxu0
        %v2588 = vadd.f32 %v2539, %v2587
        %2589 = vmatmul.bf16.gmra.mxu0 %v1106
        %v2590 = vpop.f32.mrf.mxu0
        %v2591 = vadd.f32 %v2542, %v2590
        %v2592 = vpop.f32.mrf.mxu0
        %v2593 = vadd.f32 %v2544, %v2592
        %2594 = vdwg.mxu0
        %2595 = vmatpush.bf16.msra.mxu0 %v1854
        %2596 = vmatpush.bf16.msra.mxu0 %v1853
        %2597 = vmatpush.bf16.msra.mxu0 %v1852
        %2598 = vmatpush.bf16.msra.mxu0 %v1851
        %2599 = vmatpush.bf16.msra.mxu0 %v1850
        %2600 = vmatpush.bf16.msra.mxu0 %v1849
        %2601 = vmatpush.bf16.msra.mxu0 %v1848
        %2602 = vmatpush.bf16.msra.mxu0 %v1847
        %2603 = vmatmul.bf16.gmra.mxu0 %v995
        %v2604 = vpop.f32.mrf.mxu0
        %v2605 = vadd.f32 %v2556, %v2604
        %v2606 = vpop.f32.mrf.mxu0
        %v2607 = vadd.f32 %v2558, %v2606
        %2608 = vmatmul.bf16.gmra.mxu0 %v1011
        %v2609 = vpop.f32.mrf.mxu0
        %v2610 = vadd.f32 %v2561, %v2609
        %v2611 = vpop.f32.mrf.mxu0
        %v2612 = vadd.f32 %v2563, %v2611
        %2613 = vmatmul.bf16.gmra.mxu0 %v1027
        %v2614 = vpop.f32.mrf.mxu0
        %v2615 = vadd.f32 %v2566, %v2614
        %v2616 = vpop.f32.mrf.mxu0
        %v2617 = vadd.f32 %v2568, %v2616
        %2618 = vmatmul.bf16.gmra.mxu0 %v1043
        %v2619 = vpop.f32.mrf.mxu0
        %v2620 = vadd.f32 %v2571, %v2619
        %v2621 = vpop.f32.mrf.mxu0
        %v2622 = vadd.f32 %v2573, %v2621
        %2623 = vmatmul.bf16.gmra.mxu0 %v1059
        %v2624 = vpop.f32.mrf.mxu0
        %v2625 = vadd.f32 %v2576, %v2624
        %v2626 = vpop.f32.mrf.mxu0
        %v2627 = vadd.f32 %v2578, %v2626
        %2628 = vmatmul.bf16.gmra.mxu0 %v1075
        %v2629 = vpop.f32.mrf.mxu0
        %v2630 = vadd.f32 %v2581, %v2629
        %v2631 = vpop.f32.mrf.mxu0
        %v2632 = vadd.f32 %v2583, %v2631
        %2633 = vmatmul.bf16.gmra.mxu0 %v1091
        %v2634 = vpop.f32.mrf.mxu0
        %v2635 = vadd.f32 %v2586, %v2634
        %v2636 = vpop.f32.mrf.mxu0
        %v2637 = vadd.f32 %v2588, %v2636
        %2638 = vmatmul.bf16.gmra.mxu0 %v1107
        %v2639 = vpop.f32.mrf.mxu0
        %v2640 = vadd.f32 %v2591, %v2639
        %v2641 = vpop.f32.mrf.mxu0
        %v2642 = vadd.f32 %v2593, %v2641
        %2643 = vdwg.mxu0
        %2644 = vmatpush.bf16.msra.mxu0 %v1862
        %2645 = vmatpush.bf16.msra.mxu0 %v1861
        %2646 = vmatpush.bf16.msra.mxu0 %v1860
        %2647 = vmatpush.bf16.msra.mxu0 %v1859
        %2648 = vmatpush.bf16.msra.mxu0 %v1858
        %2649 = vmatpush.bf16.msra.mxu0 %v1857
        %2650 = vmatpush.bf16.msra.mxu0 %v1856
        %2651 = vmatpush.bf16.msra.mxu0 %v1855
        %2652 = vmatmul.bf16.gmra.mxu0 %v996
        %v2653 = vpop.f32.mrf.mxu0
        %v2654 = vadd.f32 %v2605, %v2653
        %v2655 = vpop.f32.mrf.mxu0
        %v2656 = vadd.f32 %v2607, %v2655
        %2657 = vmatmul.bf16.gmra.mxu0 %v1012
        %v2658 = vpop.f32.mrf.mxu0
        %v2659 = vadd.f32 %v2610, %v2658
        %v2660 = vpop.f32.mrf.mxu0
        %v2661 = vadd.f32 %v2612, %v2660
        %2662 = vmatmul.bf16.gmra.mxu0 %v1028
        %v2663 = vpop.f32.mrf.mxu0
        %v2664 = vadd.f32 %v2615, %v2663
        %v2665 = vpop.f32.mrf.mxu0
        %v2666 = vadd.f32 %v2617, %v2665
        %2667 = vmatmul.bf16.gmra.mxu0 %v1044
        %v2668 = vpop.f32.mrf.mxu0
        %v2669 = vadd.f32 %v2620, %v2668
        %v2670 = vpop.f32.mrf.mxu0
        %v2671 = vadd.f32 %v2622, %v2670
        %2672 = vmatmul.bf16.gmra.mxu0 %v1060
        %v2673 = vpop.f32.mrf.mxu0
        %v2674 = vadd.f32 %v2625, %v2673
        %v2675 = vpop.f32.mrf.mxu0
        %v2676 = vadd.f32 %v2627, %v2675
        %2677 = vmatmul.bf16.gmra.mxu0 %v1076
        %v2678 = vpop.f32.mrf.mxu0
        %v2679 = vadd.f32 %v2630, %v2678
        %v2680 = vpop.f32.mrf.mxu0
        %v2681 = vadd.f32 %v2632, %v2680
        %2682 = vmatmul.bf16.gmra.mxu0 %v1092
        %v2683 = vpop.f32.mrf.mxu0
        %v2684 = vadd.f32 %v2635, %v2683
        %v2685 = vpop.f32.mrf.mxu0
        %v2686 = vadd.f32 %v2637, %v2685
        %2687 = vmatmul.bf16.gmra.mxu0 %v1108
        %v2688 = vpop.f32.mrf.mxu0
        %v2689 = vadd.f32 %v2640, %v2688
        %v2690 = vpop.f32.mrf.mxu0
        %v2691 = vadd.f32 %v2642, %v2690
        %2692 = vdwg.mxu0
        %2693 = vmatpush.bf16.msra.mxu0 %v1870
        %2694 = vmatpush.bf16.msra.mxu0 %v1869
        %2695 = vmatpush.bf16.msra.mxu0 %v1868
        %2696 = vmatpush.bf16.msra.mxu0 %v1867
        %2697 = vmatpush.bf16.msra.mxu0 %v1866
        %2698 = vmatpush.bf16.msra.mxu0 %v1865
        %2699 = vmatpush.bf16.msra.mxu0 %v1864
        %2700 = vmatpush.bf16.msra.mxu0 %v1863
        %2701 = vmatmul.bf16.gmra.mxu0 %v997
        %v2702 = vpop.f32.mrf.mxu0
        %v2703 = vadd.f32 %v2654, %v2702
        %v2704 = vpop.f32.mrf.mxu0
        %v2705 = vadd.f32 %v2656, %v2704
        %2706 = vmatmul.bf16.gmra.mxu0 %v1013
        %v2707 = vpop.f32.mrf.mxu0
        %v2708 = vadd.f32 %v2659, %v2707
        %v2709 = vpop.f32.mrf.mxu0
        %v2710 = vadd.f32 %v2661, %v2709
        %2711 = vmatmul.bf16.gmra.mxu0 %v1029
        %v2712 = vpop.f32.mrf.mxu0
        %v2713 = vadd.f32 %v2664, %v2712
        %v2714 = vpop.f32.mrf.mxu0
        %v2715 = vadd.f32 %v2666, %v2714
        %2716 = vmatmul.bf16.gmra.mxu0 %v1045
        %v2717 = vpop.f32.mrf.mxu0
        %v2718 = vadd.f32 %v2669, %v2717
        %v2719 = vpop.f32.mrf.mxu0
        %v2720 = vadd.f32 %v2671, %v2719
        %2721 = vmatmul.bf16.gmra.mxu0 %v1061
        %v2722 = vpop.f32.mrf.mxu0
        %v2723 = vadd.f32 %v2674, %v2722
        %v2724 = vpop.f32.mrf.mxu0
        %v2725 = vadd.f32 %v2676, %v2724
        %2726 = vmatmul.bf16.gmra.mxu0 %v1077
        %v2727 = vpop.f32.mrf.mxu0
        %v2728 = vadd.f32 %v2679, %v2727
        %v2729 = vpop.f32.mrf.mxu0
        %v2730 = vadd.f32 %v2681, %v2729
        %2731 = vmatmul.bf16.gmra.mxu0 %v1093
        %v2732 = vpop.f32.mrf.mxu0
        %v2733 = vadd.f32 %v2684, %v2732
        %v2734 = vpop.f32.mrf.mxu0
        %v2735 = vadd.f32 %v2686, %v2734
        %2736 = vmatmul.bf16.gmra.mxu0 %v1109
        %v2737 = vpop.f32.mrf.mxu0
        %v2738 = vadd.f32 %v2689, %v2737
        %v2739 = vpop.f32.mrf.mxu0
        %v2740 = vadd.f32 %v2691, %v2739
        %2741 = vdwg.mxu0
        %2742 = vmatpush.bf16.msra.mxu0 %v1878
        %2743 = vmatpush.bf16.msra.mxu0 %v1877
        %2744 = vmatpush.bf16.msra.mxu0 %v1876
        %2745 = vmatpush.bf16.msra.mxu0 %v1875
        %2746 = vmatpush.bf16.msra.mxu0 %v1874
        %2747 = vmatpush.bf16.msra.mxu0 %v1873
        %2748 = vmatpush.bf16.msra.mxu0 %v1872
        %2749 = vmatpush.bf16.msra.mxu0 %v1871
        %2750 = vmatmul.bf16.gmra.mxu0 %v998
        %v2751 = vpop.f32.mrf.mxu0
        %v2752 = vadd.f32 %v2703, %v2751
        %v2753 = vpop.f32.mrf.mxu0
        %v2754 = vadd.f32 %v2705, %v2753
        %2755 = vmatmul.bf16.gmra.mxu0 %v1014
        %v2756 = vpop.f32.mrf.mxu0
        %v2757 = vadd.f32 %v2708, %v2756
        %v2758 = vpop.f32.mrf.mxu0
        %v2759 = vadd.f32 %v2710, %v2758
        %2760 = vmatmul.bf16.gmra.mxu0 %v1030
        %v2761 = vpop.f32.mrf.mxu0
        %v2762 = vadd.f32 %v2713, %v2761
        %v2763 = vpop.f32.mrf.mxu0
        %v2764 = vadd.f32 %v2715, %v2763
        %2765 = vmatmul.bf16.gmra.mxu0 %v1046
        %v2766 = vpop.f32.mrf.mxu0
        %v2767 = vadd.f32 %v2718, %v2766
        %v2768 = vpop.f32.mrf.mxu0
        %v2769 = vadd.f32 %v2720, %v2768
        %2770 = vmatmul.bf16.gmra.mxu0 %v1062
        %v2771 = vpop.f32.mrf.mxu0
        %v2772 = vadd.f32 %v2723, %v2771
        %v2773 = vpop.f32.mrf.mxu0
        %v2774 = vadd.f32 %v2725, %v2773
        %2775 = vmatmul.bf16.gmra.mxu0 %v1078
        %v2776 = vpop.f32.mrf.mxu0
        %v2777 = vadd.f32 %v2728, %v2776
        %v2778 = vpop.f32.mrf.mxu0
        %v2779 = vadd.f32 %v2730, %v2778
        %2780 = vmatmul.bf16.gmra.mxu0 %v1094
        %v2781 = vpop.f32.mrf.mxu0
        %v2782 = vadd.f32 %v2733, %v2781
        %v2783 = vpop.f32.mrf.mxu0
        %v2784 = vadd.f32 %v2735, %v2783
        %2785 = vmatmul.bf16.gmra.mxu0 %v1110
        %v2786 = vpop.f32.mrf.mxu0
        %v2787 = vadd.f32 %v2738, %v2786
        %v2788 = vpop.f32.mrf.mxu0
        %v2789 = vadd.f32 %v2740, %v2788
        %2790 = vdwg.mxu0
        %v2791 = vtanh.pop %v2752
        %v2792 = vtanh.pop %v2754
        %v2793 = vtanh.pop %v2757
        %v2794 = vtanh.pop %v2759
        %v2795 = vtanh.pop %v2762
        %v2796 = vtanh.pop %v2764
        %v2797 = vtanh.pop %v2767
        %v2798 = vtanh.pop %v2769
        %v2799 = vtanh.pop %v2772
        %v2800 = vtanh.pop %v2774
        %v2801 = vtanh.pop %v2777
        %v2802 = vtanh.pop %v2779
        %v2803 = vtanh.pop %v2782
        %v2804 = vtanh.pop %v2784
        %v2805 = vtanh.pop %v2787
        %v2806 = vtanh.pop %v2789
        %v2807 = vpack.c.bf16 %v2791, %v2791
        %v2808 = vpack.c.bf16 %v2792, %v2792
        %v2809 = vpack.c.bf16 %v2793, %v2793
        %v2810 = vpack.c.bf16 %v2794, %v2794
        %v2811 = vpack.c.bf16 %v2795, %v2795
        %v2812 = vpack.c.bf16 %v2796, %v2796
        %v2813 = vpack.c.bf16 %v2797, %v2797
        %v2814 = vpack.c.bf16 %v2798, %v2798
        %v2815 = vpack.c.bf16 %v2799, %v2799
        %v2816 = vpack.c.bf16 %v2800, %v2800
        %v2817 = vpack.c.bf16 %v2801, %v2801
        %v2818 = vpack.c.bf16 %v2802, %v2802
        %v2819 = vpack.c.bf16 %v2803, %v2803
        %v2820 = vpack.c.bf16 %v2804, %v2804
        %v2821 = vpack.c.bf16 %v2805, %v2805
        %v2822 = vpack.c.bf16 %v2806, %v2806
        %2823 = vst [vmem:[%s208] sm:$0xf] %v2807
        %2824 = vst [vmem:[%s208 + $0x4] sm:$0xf] %v2808
        %2825 = vst [vmem:[%s208 + $0x8] sm:$0xf] %v2809
        %2826 = vst [vmem:[%s208 + $0xc] sm:$0xf] %v2810
        %2827 = vst [vmem:[%s208 + $0x10] sm:$0xf] %v2811
        %2828 = vst [vmem:[%s208 + $0x14] sm:$0xf] %v2812
        %2829 = vst [vmem:[%s208 + $0x18] sm:$0xf] %v2813
        %2830 = vst [vmem:[%s208 + $0x1c] sm:$0xf] %v2814
        %2831 = vst [vmem:[%s208 + $0x20] sm:$0xf] %v2815
        %2832 = vst [vmem:[%s208 + $0x24] sm:$0xf] %v2816
        %2833 = vst [vmem:[%s208 + $0x28] sm:$0xf] %v2817
        %2834 = vst [vmem:[%s208 + $0x2c] sm:$0xf] %v2818
        %2835 = vst [vmem:[%s208 + $0x30] sm:$0xf] %v2819
        %2836 = vst [vmem:[%s208 + $0x34] sm:$0xf] %v2820
        %2837 = vst [vmem:[%s208 + $0x38] sm:$0xf] %v2821
        %2838 = vst [vmem:[%s208 + $0x3c] sm:$0xf] %v2822
        %s2839 = sand.u32 %s97, 1
        %s2840 = scalar_lea.sflag [#allocation4], %s2839
        %s2841 = sand.u32 %s97, 1
        %s2842 = smul.addr %s2841, 64
        %s2843 = scalar_lea.vmem [#allocation7], %s2842
        // Predicated region
        $region41: #{tpu_custom_call.1} parent=31 // pred_check
          %p2844 = pneg %p107
        $region42: #{tpu_custom_call.1} parent=31 // pred_check_branch
          %2846 = sbr.rel (%p2844) target = $region44
        $region43: #{tpu_custom_call.1} parent=31 // pred_region
          %s2847 = smul.u32 16, %s21
          %2849 = vsyncadd %s2840, 0
          %s2850 = smul.addr %s2847, 4
          %s2851 = scalar_lea.hbm %s3, %s2850
          %s2852 = sshll.u32 %s2843, 4
          %s2853 = int_to_ptr.vmem [resolvable:$true] %s2852
          %s2854 = sshll.u32 %s2851, 4
          %s2855 = int_to_ptr.hbm [resolvable:$true] %s2854
          %2860 = dma.vmem_to_hbm [thread:$0]  %s2853, 1024, %s2855, %s2840, 64, 64, 4
        $region44: #{tpu_custom_call.1} parent=31 // pred_fallthru
          _
      $region32: #{tpu_custom_call.1} parent=5 // pred_fallthru
        _
      %p2861 = scmp.le.s32.totalorder 2, %s16
      // Predicated region
      $region45: #{tpu_custom_call.1} parent=5 // pred_check
        %p2862 = pneg %p2861
      $region46: #{tpu_custom_call.1} parent=5 // pred_check_branch
        %2864 = sbr.rel (%p2862) target = $region48
      $region47: #{tpu_custom_call.1} parent=5 // pred_region
        %s2865 = ssub.s32 %s16, 2
        // Predicated region
        $region49: #{tpu_custom_call.1} parent=47 // pred_check
          %p2866 = pneg %p113
        $region50: #{tpu_custom_call.1} parent=47 // pred_check_branch
          %2868 = sbr.rel (%p2866) target = $region52
        $region51: #{tpu_custom_call.1} parent=47 // pred_region
          %s2869 = sand.u32 %s98, 1
          %s2870 = scalar_lea.sflag [#allocation4], %s2869
          %s2871 = sand.u32 %s98, 1
          %s2872 = smul.addr %s2871, 64
          %s2873 = scalar_lea.vmem [#allocation7], %s2872
          %2875 = dma.done %s2870, 1024
        $region52: #{tpu_custom_call.1} parent=47 // pred_fallthru
          _
      $region48: #{tpu_custom_call.1} parent=5 // pred_fallthru
        _
    $region6: #{tpu_custom_call.1} parent=1 // loop_footer
      %s20 = sadd.s32 1, %s16
    $region7: #{tpu_custom_call.1} parent=1 // loop_footer_branch
      %15 = sbr.rel target = $region3
    $region8: #{tpu_custom_call.1} parent=1 // loop_exit
      _
    %2876 = vsyncpa [#allocation3], 1
    %s2877 = scalar_lea.sflag [#allocation3], 1
    %2878 = vsyncpa %s2877, 1
    %2879 = vsyncpa [#allocation6], 1
    %2880 = vsyncpa [#allocation4], 1
    %s2881 = scalar_lea.sflag [#allocation4], 1
    %2882 = vsyncpa %s2881, 1

</llo_original>
